<compile_context>
chip_gen: v6e
topology: v6e:2x2x1
jax: 0.10.0
libtpu: 0.0.40
codegen_flags: <defaults>
</compile_context>

<pallas_src>
import functools

import jax
import jax.numpy as jnp
from jax.experimental import pallas as pl
from jax.experimental.pallas import tpu as pltpu


def _round_up(x, m):
    return -(-x // m) * m


def _grid_plan(n, tm_max=512):
    """Pick (tm, num_tiles) for N = B*T rows: tm multiple of 128, <= tm_max,
    and >= 2 tiles whenever possible so v7x can use both TensorCores."""
    n128 = _round_up(max(n, 1), 128)
    num_tiles = pl.cdiv(n128, tm_max)
    if n128 >= 256:
        num_tiles = max(num_tiles, 2)          # megacore: both TCs on v7x
    tm = _round_up(pl.cdiv(n128, num_tiles), 128)
    num_tiles = pl.cdiv(n128, tm)
    return tm, num_tiles


def prepare_bigram_table(table, neg_inf=-1e30):
    """One-time parameter prep (hoisted out of the forward).

    Pads the (V, V) embedding table to (Vp, Vp) with Vp a multiple of 128,
    bakes the padded-class mask (columns >= V get -1e30 so they vanish from
    the logsumexp), and pre-transposes so the in-kernel gather is a plain
    (Vp, Vp) @ (Vp, TM) MXU contraction.
    """
    v = table.shape[0]
    vp = _round_up(v, 128)
    table_p = jnp.full((vp, vp), neg_inf, jnp.float32)
    table_p = table_p.at[:v, :v].set(table.astype(jnp.float32))
    return table_p.T                            # (Vp, Vp), table_t[c, v] = table_p[v, c]


def bigram_kernel(n_valid, idx_ref, tgt_ref, table_t_ref, logits_ref,
                  loss_tok_ref):
    """One row-tile of the bigram forward pass.

    idx_ref, tgt_ref : (1, TM)  int32   lane-dense token / target ids
    table_t_ref      : (Vp, Vp) float32 transposed, mask-baked embedding table
    logits_ref       : (TM, Vp)         row-major logits tile (lane-dense)
    loss_tok_ref     : (1, 1, TM) f32   per-token CE (padded rows -> 0)
    """
    tm = idx_ref.shape[1]
    vp = table_t_ref.shape[0]

    idx = idx_ref[...]                                             # (1, TM)
    tgt = tgt_ref[...]                                             # (1, TM)

    # Classes on the sublane axis, tokens on the lane axis.
    class_id = jax.lax.broadcasted_iota(jnp.int32, (vp, tm), 0)    # (Vp, TM)

    # Transposed one-hot: onehot_t[c, t] = (idx[t] == c). Pure broadcast
    # compare -- no cross-lane data movement.
    onehot_t = (class_id == idx).astype(jnp.float32)               # (Vp, TM)

    # Embedding gather on the MXU (HIGHEST precision -> exact f32 gather):
    #   logits_t[c, t] = sum_v table_t[c, v] * onehot_t[v, t] = table[idx[t], c]
    logits_t = jnp.dot(table_t_ref[...], onehot_t,
                       preferred_element_type=jnp.float32,
                       precision=jax.lax.Precision.HIGHEST)        # (Vp, TM)

    # Row-major, lane-dense logits store (one XLU transpose per tile, hidden
    # under the MXU / store slots).  Optional bf16 cast for the HBM write.
    logits_ref[...] = logits_t.T.astype(logits_ref.dtype)

    # Cross-entropy in the transposed orientation (reduce over sublanes).
    # Padded classes already carry -1e30 baked into the table, so they
    # underflow to 0 after max-subtraction -- no extra mask needed here.
    m = jnp.max(logits_t, axis=0, keepdims=True)                   # (1, TM)
    lse = m + jnp.log(jnp.sum(jnp.exp(logits_t - m), axis=0, keepdims=True))

    # Target logit via masked select + sum (no second float one-hot).
    tgt_logit = jnp.sum(jnp.where(class_id == tgt, logits_t, 0.0),
                        axis=0, keepdims=True)                     # (1, TM)

    per_tok = lse - tgt_logit                                      # (1, TM)

    # Zero out padded token rows (beyond the true N = B*T).
    pos = (pl.program_id(0) * tm
           + jax.lax.broadcasted_iota(jnp.int32, (1, tm), 1))
    per_tok = jnp.where(pos < n_valid, per_tok, 0.0)

    loss_tok_ref[...] = per_tok.reshape(1, 1, tm)


def bigram_forward(idx, targets, table_t, vocab_size, *, tm=None,
                   trim_logits=False, logits_dtype=jnp.float32):
    """Bigram forward pass.

    idx, targets : (B, T) int token / target ids.
    table_t      : (Vp, Vp) prepared table from prepare_bigram_table().
    Returns (logits, loss).  With trim_logits=False (fast path) logits has
    shape (n_pad, Vp); the valid extent matching PyTorch is [:B*T, :V].
    With trim_logits=True logits is (B*T, V) exactly (extra HBM pass).
    """
    B, T = idx.shape
    N = B * T
    vp = table_t.shape[0]

    if tm is None:
        tm, num_tiles = _grid_plan(N)
    else:
        num_tiles = pl.cdiv(_round_up(N, 128), tm)
    n_pad = num_tiles * tm

    idx_flat = idx.reshape(-1).astype(jnp.int32)
    tgt_flat = targets.reshape(-1).astype(jnp.int32)
    if n_pad != N:
        idx_flat = jnp.pad(idx_flat, (0, n_pad - N))
        tgt_flat = jnp.pad(tgt_flat, (0, n_pad - N))
    idx2d = idx_flat.reshape(1, n_pad)
    tgt2d = tgt_flat.reshape(1, n_pad)

    kernel = functools.partial(bigram_kernel, N)

    logits_p, loss_tok = pl.pallas_call(
        kernel,
        out_shape=(
            jax.ShapeDtypeStruct((n_pad, vp), logits_dtype),
            jax.ShapeDtypeStruct((num_tiles, 1, tm), jnp.float32),
        ),
        grid=(num_tiles,),
        in_specs=[
            pl.BlockSpec((1, tm), lambda i: (0, i)),
            pl.BlockSpec((1, tm), lambda i: (0, i)),
            pl.BlockSpec((vp, vp), lambda i: (0, 0)),   # table stays resident
        ],
        out_specs=[
            pl.BlockSpec((tm, vp), lambda i: (i, 0)),
            pl.BlockSpec((1, 1, tm), lambda i: (i, 0, 0)),
        ],
        compiler_params=pltpu.CompilerParams(
            dimension_semantics=("parallel",)),
    )(idx2d, tgt2d, table_t)

    loss = jnp.sum(loss_tok) * (1.0 / N)   # padded rows contribute 0

    if trim_logits:
        logits = logits_p[:N, :vocab_size]
    else:
        logits = logits_p                  # valid extent: [:N, :vocab_size]
    return logits, loss


if __name__ == "__main__":
    # Small, deterministic setup consistent with the module.
    vocab_size = 65       # e.g. tiny-shakespeare character vocab
    B, T = 2, 8

    key = jax.random.PRNGKey(0)
    k_table, k_idx, k_tgt = jax.random.split(key, 3)

    # nn.Embedding default init: N(0, 1).
    table = jax.random.normal(k_table, (vocab_size, vocab_size),
                              dtype=jnp.float32)
    idx = jax.random.randint(k_idx, (B, T), 0, vocab_size, dtype=jnp.int32)
    targets = jax.random.randint(k_tgt, (B, T), 0, vocab_size,
                                 dtype=jnp.int32)

    # One-time parameter prep (pad + mask + transpose), then the forward.
    table_t = prepare_bigram_table(table)
    logits_p, loss = bigram_forward(idx, targets, table_t, vocab_size)
    logits_p = jax.block_until_ready(logits_p)
    loss = jax.block_until_ready(loss)

    # Pure-JAX reference (mirrors the PyTorch forward).
    N = B * T
    ref_logits = table[idx.reshape(-1)]                       # (B*T, V)
    ref_lse = jax.nn.logsumexp(ref_logits, axis=-1)           # (B*T,)
    ref_tgt = jnp.take_along_axis(ref_logits,
                                  targets.reshape(-1, 1),
                                  axis=-1)[:, 0]
    ref_loss = jnp.mean(ref_lse - ref_tgt)

    # Valid extent of the (untrimmed) padded logits.
    logits_valid = logits_p[:N, :vocab_size]
    assert logits_valid.shape == (N, vocab_size)
    assert jnp.allclose(logits_valid, ref_logits, atol=1e-5, rtol=1e-5)
    assert jnp.allclose(loss, ref_loss, atol=1e-5, rtol=1e-5)

    print("KERNEL_OK")
</pallas_src>

<mosaic_0001>
module attributes {stable_mosaic.version = 11 : i64} {
  func.func @bigram_kernel(%arg0: i32, %arg1: memref<1x128xi32, #tpu.memory_space<vmem>>, %arg2: memref<1x128xi32, #tpu.memory_space<vmem>>, %arg3: memref<128x128xf32, #tpu.memory_space<vmem>>, %arg4: memref<128x128xf32, #tpu.memory_space<vmem>>, %arg5: memref<1x1x128xf32, #tpu.memory_space<vmem>>) attributes {dimension_semantics = [#tpu.dimension_semantics<parallel>], iteration_bounds = array<i64: 1>, scalar_prefetch = 0 : i64, scratch_operands = 0 : i64, tpu.core_type = #tpu.core_type<tc>, window_params = [{transform_indices = @transform_0, window_bounds = array<i64: 1, 128>}, {transform_indices = @transform_1, window_bounds = array<i64: 1, 128>}, {pipeline_mode = #tpu.pipeline_mode<synchronous>, transform_indices = @transform_2, window_bounds = array<i64: 128, 128>}, {transform_indices = @transform_3, window_bounds = array<i64: 128, 128>}, {transform_indices = @transform_4, window_bounds = array<i64: 1, 1, 128>}]} {
    %c0 = arith.constant 0 : index
    %c0_0 = arith.constant 0 : index
    %0 = vector.load %arg1[%c0, %c0_0] : memref<1x128xi32, #tpu.memory_space<vmem>>, vector<1x128xi32>
    %c0_1 = arith.constant 0 : index
    %c0_2 = arith.constant 0 : index
    %1 = vector.load %arg2[%c0_1, %c0_2] : memref<1x128xi32, #tpu.memory_space<vmem>>, vector<1x128xi32>
    %2 = tpu.iota {dimensions = array<i32: 0>} : vector<128x128xi32>
    %3 = vector.broadcast %0 : vector<1x128xi32> to vector<128x128xi32>
    %4 = arith.cmpi eq, %2, %3 : vector<128x128xi32>
    %5 = arith.extui %4 : vector<128x128xi1> to vector<128x128xi32>
    %6 = arith.sitofp %5 : vector<128x128xi32> to vector<128x128xf32>
    %c0_3 = arith.constant 0 : index
    %c0_4 = arith.constant 0 : index
    %7 = vector.load %arg3[%c0_3, %c0_4] : memref<128x128xf32, #tpu.memory_space<vmem>>, vector<128x128xf32>
    %cst = arith.constant dense<0.000000e+00> : vector<128x128xf32>
    %8 = tpu.matmul %7, %6, %cst {dimension_numbers = #tpu.dot_dimension_numbers<[1], [0], [0], [1], [0, 0, 1, 1], [], []>, precision = #tpu.contract_precision<fp32>} : vector<128x128xf32>, vector<128x128xf32>, vector<128x128xf32> -> vector<128x128xf32>
    %9 = tpu.transpose %8, [1, 0] : vector<128x128xf32> -> vector<128x128xf32>
    %c0_5 = arith.constant 0 : index
    %c0_6 = arith.constant 0 : index
    %10 = vector.load %arg4[%c0_5, %c0_6] : memref<128x128xf32, #tpu.memory_space<vmem>>, vector<128x128xf32>
    tpu.vector_store %arg4[%c0_5, %c0_6], %9 {strides = array<i32>} : memref<128x128xf32, #tpu.memory_space<vmem>>, vector<128x128xf32>,
    %cst_7 = arith.constant dense<0xFF800000> : vector<128xf32>
    %11 = vector.multi_reduction <maximumf>, %8, %cst_7 [0] : vector<128x128xf32> to vector<128xf32>
    %12 = vector.shape_cast %11 : vector<128xf32> to vector<1x128xf32>
    %13 = vector.broadcast %12 : vector<1x128xf32> to vector<128x128xf32>
    %14 = arith.subf %8, %13 : vector<128x128xf32>
    %15 = math.exp %14 : vector<128x128xf32>
    %cst_8 = arith.constant dense<0.000000e+00> : vector<128xf32>
    %16 = vector.multi_reduction <add>, %15, %cst_8 [0] : vector<128x128xf32> to vector<128xf32>
    %17 = vector.shape_cast %16 : vector<128xf32> to vector<1x128xf32>
    %18 = math.log %17 : vector<1x128xf32>
    %19 = arith.addf %12, %18 : vector<1x128xf32>
    %20 = vector.broadcast %1 : vector<1x128xi32> to vector<128x128xi32>
    %21 = arith.cmpi eq, %2, %20 : vector<128x128xi32>
    %cst_9 = arith.constant 0.000000e+00 : f32
    %22 = vector.broadcast %cst_9 : f32 to vector<128x128xf32>
    %23 = arith.select %21, %8, %22 : vector<128x128xi1>, vector<128x128xf32>
    %cst_10 = arith.constant dense<0.000000e+00> : vector<128xf32>
    %24 = vector.multi_reduction <add>, %23, %cst_10 [0] : vector<128x128xf32> to vector<128xf32>
    %25 = vector.shape_cast %24 : vector<128xf32> to vector<1x128xf32>
    %26 = arith.subf %19, %25 : vector<1x128xf32>
    %c128_i32 = arith.constant 128 : i32
    %27 = arith.muli %arg0, %c128_i32 : i32
    %28 = tpu.iota {dimensions = array<i32: 1>} : vector<1x128xi32>
    %29 = vector.broadcast %27 : i32 to vector<1x128xi32>
    %30 = arith.addi %29, %28 : vector<1x128xi32>
    %c16_i32 = arith.constant 16 : i32
    %31 = vector.broadcast %c16_i32 : i32 to vector<1x128xi32>
    %32 = arith.cmpi slt, %30, %31 : vector<1x128xi32>
    %cst_11 = arith.constant 0.000000e+00 : f32
    %33 = vector.broadcast %cst_11 : f32 to vector<1x128xf32>
    %34 = arith.select %32, %26, %33 : vector<1x128xi1>, vector<1x128xf32>
    %35 = vector.shape_cast %34 : vector<1x128xf32> to vector<1x1x128xf32>
    %c0_12 = arith.constant 0 : index
    %c0_13 = arith.constant 0 : index
    %c0_14 = arith.constant 0 : index
    %36 = vector.load %arg5[%c0_12, %c0_13, %c0_14] : memref<1x1x128xf32, #tpu.memory_space<vmem>>, vector<1x1x128xf32>
    tpu.vector_store %arg5[%c0_12, %c0_13, %c0_14], %35 {strides = array<i32>} : memref<1x1x128xf32, #tpu.memory_space<vmem>>, vector<1x1x128xf32>,
    return
  }
  func.func @transform_0(%arg0: i32) -> (i32, i32) {
    %c0_i32 = arith.constant 0 : i32
    %c0_i32_0 = arith.constant 0 : i32
    return %c0_i32, %arg0 : i32, i32
  }
  func.func @transform_1(%arg0: i32) -> (i32, i32) {
    %c0_i32 = arith.constant 0 : i32
    %c0_i32_0 = arith.constant 0 : i32
    return %c0_i32, %arg0 : i32, i32
  }
  func.func @transform_2(%arg0: i32) -> (i32, i32) {
    %c0_i32 = arith.constant 0 : i32
    %c0_i32_0 = arith.constant 0 : i32
    %c0_i32_1 = arith.constant 0 : i32
    return %c0_i32, %c0_i32_0 : i32, i32
  }
  func.func @transform_3(%arg0: i32) -> (i32, i32) {
    %c0_i32 = arith.constant 0 : i32
    %c0_i32_0 = arith.constant 0 : i32
    return %arg0, %c0_i32 : i32, i32
  }
  func.func @transform_4(%arg0: i32) -> (i32, i32, i32) {
    %c0_i32 = arith.constant 0 : i32
    %c0_i32_0 = arith.constant 0 : i32
    %c0_i32_1 = arith.constant 0 : i32
    return %arg0, %c0_i32, %c0_i32_0 : i32, i32, i32
  }
}

</mosaic_0001>

<llo_original>
// kernel: tpu_custom_call.1
$region0: #{tpu_custom_call.1}
  #allocation0 [shape = 'u32[]', space=smem, size = 0x4, offset = 0x4, fixed_abs, tag = 'smem constant byte address 0x4 - core index']
  #allocation1 [shape = 'u32[144,128]{1,0:T(1,128)}', space=vmem, size = 0x12000, scoped, tag = 'internal scratch']
  %s0 = inlined_call_operand.hbm [shape: s32[1,128], index: 0, kind: input, shape index: {}]
  %s1 = inlined_call_operand.vmem [shape: s32[1,128], index: 1, kind: input, shape index: {}]
  %s2 = inlined_call_operand.hbm [shape: f32[128,128], index: 2, kind: input, shape index: {}]
  %s3 = inlined_call_operand.hbm [shape: f32[128,128], index: 3, kind: output, shape index: {0}]
  %s4 = inlined_call_operand.hbm [shape: f32[1,1,128], index: 4, kind: output, shape index: {1}]
  %5 = xla_tuple %s3, %s4
  %s6 = sld [smem:[#allocation0]]
  $region38: #{tpu_custom_call.1} parent=0
    _
  %s8 = ssub.s32 1, %s6
  %s9 = scalar_select 0, %s8, %s6
  $region1: #{tpu_custom_call.1} parent=0
    #allocation2 [shape = 'u8[512]{0}', space=vmem, size = 0x400, scoped, tag = 'input window, operand 0, single buffered']
    #allocation3 [shape = 's32[1]{0}', space=sflag, size = 0x4, scoped, tag = 'scoped memory for tpu_custom_call.1']
    #allocation4 [shape = 's32[1]{0}', space=sflag, size = 0x4, scoped, tag = 'scoped memory for tpu_custom_call.1']
    #allocation5 [shape = 'u8[65536]{0}', space=vmem, size = 0x10000, scoped, tag = 'input window, operand 2, single buffered']
    #allocation6 [shape = 's32[1]{0}', space=sflag, size = 0x4, scoped, tag = 'scoped memory for tpu_custom_call.1']
    #allocation7 [shape = 'u8[65536]{0}', space=vmem, size = 0x10000, scoped, tag = 'output window, operand 0, single buffered']
    #allocation8 [shape = 'u8[512]{0}', space=vmem, size = 0x400, scoped, tag = 'output window, operand 1, single buffered']
    #allocation9 [shape = 's32[1]{0}', space=sflag, size = 0x4, scoped, tag = 'scoped memory for tpu_custom_call.1']
    %10 = vsyncpa [#allocation3], 0
    %11 = vsyncpa [#allocation6], 0
    %12 = vsyncpa [#allocation4], 0
    %13 = vsyncpa [#allocation9], 0
    // Predicated region
    $region2: #{tpu_custom_call.1} parent=1 // pred_check
      _
    $region3: #{tpu_custom_call.1} parent=1 // pred_check_branch
      %15 = sbr.rel (0) target = $region5
    $region4: #{tpu_custom_call.1} parent=1 // pred_region
      %s17 = ssub.s32 16, 16
      %18 = vsyncadd [#allocation3], %s17
      %s20 = sshll.u32 [#allocation2], 4
      %s21 = int_to_ptr.vmem [resolvable:$true] %s20
      %23 = dma.hbm_to_vmem [thread:$0]  %s0, 16, %s21, [#allocation3]
    $region5: #{tpu_custom_call.1} parent=1 // pred_fallthru
      _
    // Predicated region
    $region6: #{tpu_custom_call.1} parent=1 // pred_check
      _
    $region7: #{tpu_custom_call.1} parent=1 // pred_check_branch
      %25 = sbr.rel (0) target = $region9
    $region8: #{tpu_custom_call.1} parent=1 // pred_region
      _
    $region9: #{tpu_custom_call.1} parent=1 // pred_fallthru
      _
    // Predicated region
    $region10: #{tpu_custom_call.1} parent=1 // pred_check
      _
    $region11: #{tpu_custom_call.1} parent=1 // pred_check_branch
      %27 = sbr.rel (0) target = $region13
    $region12: #{tpu_custom_call.1} parent=1 // pred_region
      %s29 = ssub.s32 2048, 2048
      %30 = vsyncadd [#allocation6], %s29
      %s31 = sshll.u32 [#allocation5], 4
      %s32 = int_to_ptr.vmem [resolvable:$true] %s31
      %37 = dma.hbm_to_vmem [thread:$0]  %s2, 2048, %s32, [#allocation6], 128, 128, 8
    $region13: #{tpu_custom_call.1} parent=1 // pred_fallthru
      _
    // Predicated region
    $region14: #{tpu_custom_call.1} parent=1 // pred_check
      _
    $region15: #{tpu_custom_call.1} parent=1 // pred_check_branch
      %39 = sbr.rel (0) target = $region17
    $region16: #{tpu_custom_call.1} parent=1 // pred_region
      %40 = dma.done [#allocation3], 16
    $region17: #{tpu_custom_call.1} parent=1 // pred_fallthru
      _
    // Predicated region
    $region18: #{tpu_custom_call.1} parent=1 // pred_check
      _
    $region19: #{tpu_custom_call.1} parent=1 // pred_check_branch
      %42 = sbr.rel (0) target = $region21
    $region20: #{tpu_custom_call.1} parent=1 // pred_region
      %43 = dma.done [#allocation6], 2048
    $region21: #{tpu_custom_call.1} parent=1 // pred_fallthru
      _
    %v44 = vld [vmem:[#allocation2] sm:$0x1]
    %v45 = vld [vmem:[%s1] sm:$0x1]
    %v46 = vlaneseq
    %v47 = vshrl.u32 %v46, 7
    %v48 = vadd.s32 %v47, 8
    %v49 = vadd.s32 %v47, 16
    %v50 = vadd.s32 %v47, 24
    %v51 = vadd.s32 %v47, 32
    %v52 = vadd.s32 %v47, 40
    %v53 = vadd.s32 %v47, 48
    %v54 = vadd.s32 %v47, 56
    %v55 = vadd.s32 %v47, 64
    %v56 = vadd.s32 %v47, 72
    %v57 = vadd.s32 %v47, 80
    %v58 = vadd.s32 %v47, 88
    %v59 = vadd.s32 %v47, 96
    %v60 = vadd.s32 %v47, 104
    %v61 = vadd.s32 %v47, 112
    %v62 = vadd.s32 %v47, 120
    %v63 = vlaneseq
    %v64 = vshrl.u32 %v63, 7
    %v65 = vsub.s32 0, %v64
    %v66 = vrot.slane %v44, %v65
    %vm67 = vcmp.eq.s32.totalorder %v47, %v66
    %vm68 = vcmp.eq.s32.totalorder %v48, %v66
    %vm69 = vcmp.eq.s32.totalorder %v49, %v66
    %vm70 = vcmp.eq.s32.totalorder %v50, %v66
    %vm71 = vcmp.eq.s32.totalorder %v51, %v66
    %vm72 = vcmp.eq.s32.totalorder %v52, %v66
    %vm73 = vcmp.eq.s32.totalorder %v53, %v66
    %vm74 = vcmp.eq.s32.totalorder %v54, %v66
    %vm75 = vcmp.eq.s32.totalorder %v55, %v66
    %vm76 = vcmp.eq.s32.totalorder %v56, %v66
    %vm77 = vcmp.eq.s32.totalorder %v57, %v66
    %vm78 = vcmp.eq.s32.totalorder %v58, %v66
    %vm79 = vcmp.eq.s32.totalorder %v59, %v66
    %vm80 = vcmp.eq.s32.totalorder %v60, %v66
    %vm81 = vcmp.eq.s32.totalorder %v61, %v66
    %vm82 = vcmp.eq.s32.totalorder %v62, %v66
    %v83 = vsel %vm67, 1, 0
    %v84 = vsel %vm68, 1, 0
    %v85 = vsel %vm69, 1, 0
    %v86 = vsel %vm70, 1, 0
    %v87 = vsel %vm71, 1, 0
    %v88 = vsel %vm72, 1, 0
    %v89 = vsel %vm73, 1, 0
    %v90 = vsel %vm74, 1, 0
    %v91 = vsel %vm75, 1, 0
    %v92 = vsel %vm76, 1, 0
    %v93 = vsel %vm77, 1, 0
    %v94 = vsel %vm78, 1, 0
    %v95 = vsel %vm79, 1, 0
    %v96 = vsel %vm80, 1, 0
    %v97 = vsel %vm81, 1, 0
    %v98 = vsel %vm82, 1, 0
    %v99 = vcvt.s32.f32 %v83
    %v100 = vcvt.s32.f32 %v84
    %v101 = vcvt.s32.f32 %v85
    %v102 = vcvt.s32.f32 %v86
    %v103 = vcvt.s32.f32 %v87
    %v104 = vcvt.s32.f32 %v88
    %v105 = vcvt.s32.f32 %v89
    %v106 = vcvt.s32.f32 %v90
    %v107 = vcvt.s32.f32 %v91
    %v108 = vcvt.s32.f32 %v92
    %v109 = vcvt.s32.f32 %v93
    %v110 = vcvt.s32.f32 %v94
    %v111 = vcvt.s32.f32 %v95
    %v112 = vcvt.s32.f32 %v96
    %v113 = vcvt.s32.f32 %v97
    %v114 = vcvt.s32.f32 %v98
    %v115 = vld [vmem:[#allocation5] sm:$0xff]
    %v116 = vld [vmem:[#allocation5 + $0x8] sm:$0xff]
    %v117 = vld [vmem:[#allocation5 + $0x10] sm:$0xff]
    %v118 = vld [vmem:[#allocation5 + $0x18] sm:$0xff]
    %v119 = vld [vmem:[#allocation5 + $0x20] sm:$0xff]
    %v120 = vld [vmem:[#allocation5 + $0x28] sm:$0xff]
    %v121 = vld [vmem:[#allocation5 + $0x30] sm:$0xff]
    %v122 = vld [vmem:[#allocation5 + $0x38] sm:$0xff]
    %v123 = vld [vmem:[#allocation5 + $0x40] sm:$0xff]
    %v124 = vld [vmem:[#allocation5 + $0x48] sm:$0xff]
    %v125 = vld [vmem:[#allocation5 + $0x50] sm:$0xff]
    %v126 = vld [vmem:[#allocation5 + $0x58] sm:$0xff]
    %v127 = vld [vmem:[#allocation5 + $0x60] sm:$0xff]
    %v128 = vld [vmem:[#allocation5 + $0x68] sm:$0xff]
    %v129 = vld [vmem:[#allocation5 + $0x70] sm:$0xff]
    %v130 = vld [vmem:[#allocation5 + $0x78] sm:$0xff]
    %131 = vmatprep.subr.mxu0 0.0
    %v132 = vand.u32 %v114, 4294901760
    %133 = vmatpush1.msra.mxu0 %v132
    %134 = vmatprep.subr.mxu0 0.0
    %v135 = vand.u32 %v113, 4294901760
    %136 = vmatpush1.msra.mxu0 %v135
    %137 = vmatprep.subr.mxu0 0.0
    %v138 = vand.u32 %v112, 4294901760
    %139 = vmatpush1.msra.mxu0 %v138
    %140 = vmatprep.subr.mxu0 0.0
    %v141 = vand.u32 %v111, 4294901760
    %142 = vmatpush1.msra.mxu0 %v141
    %143 = vmatprep.subr.mxu0 0.0
    %v144 = vand.u32 %v110, 4294901760
    %145 = vmatpush1.msra.mxu0 %v144
    %146 = vmatprep.subr.mxu0 0.0
    %v147 = vand.u32 %v109, 4294901760
    %148 = vmatpush1.msra.mxu0 %v147
    %149 = vmatprep.subr.mxu0 0.0
    %v150 = vand.u32 %v108, 4294901760
    %151 = vmatpush1.msra.mxu0 %v150
    %152 = vmatprep.subr.mxu0 0.0
    %v153 = vand.u32 %v107, 4294901760
    %154 = vmatpush1.msra.mxu0 %v153
    %155 = vmatprep.subr.mxu0 0.0
    %v156 = vand.u32 %v106, 4294901760
    %157 = vmatpush1.msra.mxu0 %v156
    %158 = vmatprep.subr.mxu0 0.0
    %v159 = vand.u32 %v105, 4294901760
    %160 = vmatpush1.msra.mxu0 %v159
    %161 = vmatprep.subr.mxu0 0.0
    %v162 = vand.u32 %v104, 4294901760
    %163 = vmatpush1.msra.mxu0 %v162
    %164 = vmatprep.subr.mxu0 0.0
    %v165 = vand.u32 %v103, 4294901760
    %166 = vmatpush1.msra.mxu0 %v165
    %167 = vmatprep.subr.mxu0 0.0
    %v168 = vand.u32 %v102, 4294901760
    %169 = vmatpush1.msra.mxu0 %v168
    %170 = vmatprep.subr.mxu0 0.0
    %v171 = vand.u32 %v101, 4294901760
    %172 = vmatpush1.msra.mxu0 %v171
    %173 = vmatprep.subr.mxu0 0.0
    %v174 = vand.u32 %v100, 4294901760
    %175 = vmatpush1.msra.mxu0 %v174
    %176 = vmatprep.subr.mxu0 0.0
    %v177 = vand.u32 %v99, 4294901760
    %178 = vmatpush1.msra.mxu0 %v177
    %179 = vmatprep.subr.mxu0 0.0
    %180 = vmatpush2.msra.mxu0 0.0
    %181 = vmatprep.subr.mxu0 0.0
    %182 = vmatpush2.msra.mxu0 0.0
    %183 = vmatprep.subr.mxu0 0.0
    %184 = vmatpush2.msra.mxu0 0.0
    %185 = vmatprep.subr.mxu0 0.0
    %186 = vmatpush2.msra.mxu0 0.0
    %187 = vmatprep.subr.mxu0 0.0
    %188 = vmatpush2.msra.mxu0 0.0
    %189 = vmatprep.subr.mxu0 0.0
    %190 = vmatpush2.msra.mxu0 0.0
    %191 = vmatprep.subr.mxu0 0.0
    %192 = vmatpush2.msra.mxu0 0.0
    %193 = vmatprep.subr.mxu0 0.0
    %194 = vmatpush2.msra.mxu0 0.0
    %195 = vmatprep.subr.mxu0 0.0
    %196 = vmatpush2.msra.mxu0 0.0
    %197 = vmatprep.subr.mxu0 0.0
    %198 = vmatpush2.msra.mxu0 0.0
    %199 = vmatprep.subr.mxu0 0.0
    %200 = vmatpush2.msra.mxu0 0.0
    %201 = vmatprep.subr.mxu0 0.0
    %202 = vmatpush2.msra.mxu0 0.0
    %203 = vmatprep.subr.mxu0 0.0
    %204 = vmatpush2.msra.mxu0 0.0
    %205 = vmatprep.subr.mxu0 0.0
    %206 = vmatpush2.msra.mxu0 0.0
    %207 = vmatprep.subr.mxu0 0.0
    %208 = vmatpush2.msra.mxu0 0.0
    %209 = vmatprep.subr.mxu0 0.0
    %210 = vmatpush2.msra.mxu0 0.0
    %211 = vmatprep.mubr.f32.mxu0 0.0
    %v212 = vand.u32 %v115, 4294901760
    %v213 = vsub.f32 %v115, %v212
    %v214 = vand.u32 %v213, 4294901760
    %v215 = vsub.f32 %v213, %v214
    %v216 = vand.u32 %v215, 4294901760
    %217 = vmatmul.mubr.f32.gmra.mxu0 %v216
    %v218 = vpop.f32.mrf.mxu0
    %v219 = vadd.f32 0.0, %v218
    %v220 = vpop.f32.mrf.mxu0
    %221 = vmatprep.mubr.f32.mxu0 0.0
    %v222 = vand.u32 %v116, 4294901760
    %v223 = vsub.f32 %v116, %v222
    %v224 = vand.u32 %v223, 4294901760
    %v225 = vsub.f32 %v223, %v224
    %v226 = vand.u32 %v225, 4294901760
    %227 = vmatmul.mubr.f32.gmra.mxu0 %v226
    %v228 = vpop.f32.mrf.mxu0
    %v229 = vadd.f32 0.0, %v228
    %v230 = vpop.f32.mrf.mxu0
    %231 = vmatprep.mubr.f32.mxu0 0.0
    %v232 = vand.u32 %v117, 4294901760
    %v233 = vsub.f32 %v117, %v232
    %v234 = vand.u32 %v233, 4294901760
    %v235 = vsub.f32 %v233, %v234
    %v236 = vand.u32 %v235, 4294901760
    %237 = vmatmul.mubr.f32.gmra.mxu0 %v236
    %v238 = vpop.f32.mrf.mxu0
    %v239 = vadd.f32 0.0, %v238
    %v240 = vpop.f32.mrf.mxu0
    %241 = vmatprep.mubr.f32.mxu0 0.0
    %v242 = vand.u32 %v118, 4294901760
    %v243 = vsub.f32 %v118, %v242
    %v244 = vand.u32 %v243, 4294901760
    %v245 = vsub.f32 %v243, %v244
    %v246 = vand.u32 %v245, 4294901760
    %247 = vmatmul.mubr.f32.gmra.mxu0 %v246
    %v248 = vpop.f32.mrf.mxu0
    %v249 = vadd.f32 0.0, %v248
    %v250 = vpop.f32.mrf.mxu0
    %251 = vmatprep.mubr.f32.mxu0 0.0
    %v252 = vand.u32 %v119, 4294901760
    %v253 = vsub.f32 %v119, %v252
    %v254 = vand.u32 %v253, 4294901760
    %v255 = vsub.f32 %v253, %v254
    %v256 = vand.u32 %v255, 4294901760
    %257 = vmatmul.mubr.f32.gmra.mxu0 %v256
    %v258 = vpop.f32.mrf.mxu0
    %v259 = vadd.f32 0.0, %v258
    %v260 = vpop.f32.mrf.mxu0
    %261 = vmatprep.mubr.f32.mxu0 0.0
    %v262 = vand.u32 %v120, 4294901760
    %v263 = vsub.f32 %v120, %v262
    %v264 = vand.u32 %v263, 4294901760
    %v265 = vsub.f32 %v263, %v264
    %v266 = vand.u32 %v265, 4294901760
    %267 = vmatmul.mubr.f32.gmra.mxu0 %v266
    %v268 = vpop.f32.mrf.mxu0
    %v269 = vadd.f32 0.0, %v268
    %v270 = vpop.f32.mrf.mxu0
    %271 = vmatprep.mubr.f32.mxu0 0.0
    %v272 = vand.u32 %v121, 4294901760
    %v273 = vsub.f32 %v121, %v272
    %v274 = vand.u32 %v273, 4294901760
    %v275 = vsub.f32 %v273, %v274
    %v276 = vand.u32 %v275, 4294901760
    %277 = vmatmul.mubr.f32.gmra.mxu0 %v276
    %v278 = vpop.f32.mrf.mxu0
    %v279 = vadd.f32 0.0, %v278
    %v280 = vpop.f32.mrf.mxu0
    %281 = vmatprep.mubr.f32.mxu0 0.0
    %v282 = vand.u32 %v122, 4294901760
    %v283 = vsub.f32 %v122, %v282
    %v284 = vand.u32 %v283, 4294901760
    %v285 = vsub.f32 %v283, %v284
    %v286 = vand.u32 %v285, 4294901760
    %287 = vmatmul.mubr.f32.gmra.mxu0 %v286
    %v288 = vpop.f32.mrf.mxu0
    %v289 = vadd.f32 0.0, %v288
    %v290 = vpop.f32.mrf.mxu0
    %291 = vmatprep.mubr.f32.mxu0 0.0
    %v292 = vand.u32 %v123, 4294901760
    %v293 = vsub.f32 %v123, %v292
    %v294 = vand.u32 %v293, 4294901760
    %v295 = vsub.f32 %v293, %v294
    %v296 = vand.u32 %v295, 4294901760
    %297 = vmatmul.mubr.f32.gmra.mxu0 %v296
    %v298 = vpop.f32.mrf.mxu0
    %v299 = vadd.f32 0.0, %v298
    %v300 = vpop.f32.mrf.mxu0
    %301 = vmatprep.mubr.f32.mxu0 0.0
    %v302 = vand.u32 %v124, 4294901760
    %v303 = vsub.f32 %v124, %v302
    %v304 = vand.u32 %v303, 4294901760
    %v305 = vsub.f32 %v303, %v304
    %v306 = vand.u32 %v305, 4294901760
    %307 = vmatmul.mubr.f32.gmra.mxu0 %v306
    %v308 = vpop.f32.mrf.mxu0
    %v309 = vadd.f32 0.0, %v308
    %v310 = vpop.f32.mrf.mxu0
    %311 = vmatprep.mubr.f32.mxu0 0.0
    %v312 = vand.u32 %v125, 4294901760
    %v313 = vsub.f32 %v125, %v312
    %v314 = vand.u32 %v313, 4294901760
    %v315 = vsub.f32 %v313, %v314
    %v316 = vand.u32 %v315, 4294901760
    %317 = vmatmul.mubr.f32.gmra.mxu0 %v316
    %v318 = vpop.f32.mrf.mxu0
    %v319 = vadd.f32 0.0, %v318
    %v320 = vpop.f32.mrf.mxu0
    %321 = vmatprep.mubr.f32.mxu0 0.0
    %v322 = vand.u32 %v126, 4294901760
    %v323 = vsub.f32 %v126, %v322
    %v324 = vand.u32 %v323, 4294901760
    %v325 = vsub.f32 %v323, %v324
    %v326 = vand.u32 %v325, 4294901760
    %327 = vmatmul.mubr.f32.gmra.mxu0 %v326
    %v328 = vpop.f32.mrf.mxu0
    %v329 = vadd.f32 0.0, %v328
    %v330 = vpop.f32.mrf.mxu0
    %331 = vmatprep.mubr.f32.mxu0 0.0
    %v332 = vand.u32 %v127, 4294901760
    %v333 = vsub.f32 %v127, %v332
    %v334 = vand.u32 %v333, 4294901760
    %v335 = vsub.f32 %v333, %v334
    %v336 = vand.u32 %v335, 4294901760
    %337 = vmatmul.mubr.f32.gmra.mxu0 %v336
    %v338 = vpop.f32.mrf.mxu0
    %v339 = vadd.f32 0.0, %v338
    %v340 = vpop.f32.mrf.mxu0
    %341 = vmatprep.mubr.f32.mxu0 0.0
    %v342 = vand.u32 %v128, 4294901760
    %v343 = vsub.f32 %v128, %v342
    %v344 = vand.u32 %v343, 4294901760
    %v345 = vsub.f32 %v343, %v344
    %v346 = vand.u32 %v345, 4294901760
    %347 = vmatmul.mubr.f32.gmra.mxu0 %v346
    %v348 = vpop.f32.mrf.mxu0
    %v349 = vadd.f32 0.0, %v348
    %v350 = vpop.f32.mrf.mxu0
    %351 = vmatprep.mubr.f32.mxu0 0.0
    %v352 = vand.u32 %v129, 4294901760
    %v353 = vsub.f32 %v129, %v352
    %v354 = vand.u32 %v353, 4294901760
    %v355 = vsub.f32 %v353, %v354
    %v356 = vand.u32 %v355, 4294901760
    %357 = vmatmul.mubr.f32.gmra.mxu0 %v356
    %v358 = vpop.f32.mrf.mxu0
    %v359 = vadd.f32 0.0, %v358
    %v360 = vpop.f32.mrf.mxu0
    %361 = vmatprep.mubr.f32.mxu0 0.0
    %v362 = vand.u32 %v130, 4294901760
    %v363 = vsub.f32 %v130, %v362
    %v364 = vand.u32 %v363, 4294901760
    %v365 = vsub.f32 %v363, %v364
    %v366 = vand.u32 %v365, 4294901760
    %367 = vmatmul.mubr.f32.gmra.mxu0 %v366
    %v368 = vpop.f32.mrf.mxu0
    %v369 = vadd.f32 0.0, %v368
    %v370 = vpop.f32.mrf.mxu0
    %371 = vdwg.mxu0
    %372 = vmatprep.subr.mxu0 0.0
    %v373 = vand.u32 %v114, 4294901760
    %v374 = vsub.f32 %v114, %v373
    %v375 = vand.u32 %v374, 4294901760
    %v376 = vsub.f32 %v374, %v375
    %v377 = vand.u32 %v376, 4294901760
    %378 = vmatpush1.msra.mxu0 %v377
    %379 = vmatprep.subr.mxu0 0.0
    %v380 = vand.u32 %v113, 4294901760
    %v381 = vsub.f32 %v113, %v380
    %v382 = vand.u32 %v381, 4294901760
    %v383 = vsub.f32 %v381, %v382
    %v384 = vand.u32 %v383, 4294901760
    %385 = vmatpush1.msra.mxu0 %v384
    %386 = vmatprep.subr.mxu0 0.0
    %v387 = vand.u32 %v112, 4294901760
    %v388 = vsub.f32 %v112, %v387
    %v389 = vand.u32 %v388, 4294901760
    %v390 = vsub.f32 %v388, %v389
    %v391 = vand.u32 %v390, 4294901760
    %392 = vmatpush1.msra.mxu0 %v391
    %393 = vmatprep.subr.mxu0 0.0
    %v394 = vand.u32 %v111, 4294901760
    %v395 = vsub.f32 %v111, %v394
    %v396 = vand.u32 %v395, 4294901760
    %v397 = vsub.f32 %v395, %v396
    %v398 = vand.u32 %v397, 4294901760
    %399 = vmatpush1.msra.mxu0 %v398
    %400 = vmatprep.subr.mxu0 0.0
    %v401 = vand.u32 %v110, 4294901760
    %v402 = vsub.f32 %v110, %v401
    %v403 = vand.u32 %v402, 4294901760
    %v404 = vsub.f32 %v402, %v403
    %v405 = vand.u32 %v404, 4294901760
    %406 = vmatpush1.msra.mxu0 %v405
    %407 = vmatprep.subr.mxu0 0.0
    %v408 = vand.u32 %v109, 4294901760
    %v409 = vsub.f32 %v109, %v408
    %v410 = vand.u32 %v409, 4294901760
    %v411 = vsub.f32 %v409, %v410
    %v412 = vand.u32 %v411, 4294901760
    %413 = vmatpush1.msra.mxu0 %v412
    %414 = vmatprep.subr.mxu0 0.0
    %v415 = vand.u32 %v108, 4294901760
    %v416 = vsub.f32 %v108, %v415
    %v417 = vand.u32 %v416, 4294901760
    %v418 = vsub.f32 %v416, %v417
    %v419 = vand.u32 %v418, 4294901760
    %420 = vmatpush1.msra.mxu0 %v419
    %421 = vmatprep.subr.mxu0 0.0
    %v422 = vand.u32 %v107, 4294901760
    %v423 = vsub.f32 %v107, %v422
    %v424 = vand.u32 %v423, 4294901760
    %v425 = vsub.f32 %v423, %v424
    %v426 = vand.u32 %v425, 4294901760
    %427 = vmatpush1.msra.mxu0 %v426
    %428 = vmatprep.subr.mxu0 0.0
    %v429 = vand.u32 %v106, 4294901760
    %v430 = vsub.f32 %v106, %v429
    %v431 = vand.u32 %v430, 4294901760
    %v432 = vsub.f32 %v430, %v431
    %v433 = vand.u32 %v432, 4294901760
    %434 = vmatpush1.msra.mxu0 %v433
    %435 = vmatprep.subr.mxu0 0.0
    %v436 = vand.u32 %v105, 4294901760
    %v437 = vsub.f32 %v105, %v436
    %v438 = vand.u32 %v437, 4294901760
    %v439 = vsub.f32 %v437, %v438
    %v440 = vand.u32 %v439, 4294901760
    %441 = vmatpush1.msra.mxu0 %v440
    %442 = vmatprep.subr.mxu0 0.0
    %v443 = vand.u32 %v104, 4294901760
    %v444 = vsub.f32 %v104, %v443
    %v445 = vand.u32 %v444, 4294901760
    %v446 = vsub.f32 %v444, %v445
    %v447 = vand.u32 %v446, 4294901760
    %448 = vmatpush1.msra.mxu0 %v447
    %449 = vmatprep.subr.mxu0 0.0
    %v450 = vand.u32 %v103, 4294901760
    %v451 = vsub.f32 %v103, %v450
    %v452 = vand.u32 %v451, 4294901760
    %v453 = vsub.f32 %v451, %v452
    %v454 = vand.u32 %v453, 4294901760
    %455 = vmatpush1.msra.mxu0 %v454
    %456 = vmatprep.subr.mxu0 0.0
    %v457 = vand.u32 %v102, 4294901760
    %v458 = vsub.f32 %v102, %v457
    %v459 = vand.u32 %v458, 4294901760
    %v460 = vsub.f32 %v458, %v459
    %v461 = vand.u32 %v460, 4294901760
    %462 = vmatpush1.msra.mxu0 %v461
    %463 = vmatprep.subr.mxu0 0.0
    %v464 = vand.u32 %v101, 4294901760
    %v465 = vsub.f32 %v101, %v464
    %v466 = vand.u32 %v465, 4294901760
    %v467 = vsub.f32 %v465, %v466
    %v468 = vand.u32 %v467, 4294901760
    %469 = vmatpush1.msra.mxu0 %v468
    %470 = vmatprep.subr.mxu0 0.0
    %v471 = vand.u32 %v100, 4294901760
    %v472 = vsub.f32 %v100, %v471
    %v473 = vand.u32 %v472, 4294901760
    %v474 = vsub.f32 %v472, %v473
    %v475 = vand.u32 %v474, 4294901760
    %476 = vmatpush1.msra.mxu0 %v475
    %477 = vmatprep.subr.mxu0 0.0
    %v478 = vand.u32 %v99, 4294901760
    %v479 = vsub.f32 %v99, %v478
    %v480 = vand.u32 %v479, 4294901760
    %v481 = vsub.f32 %v479, %v480
    %v482 = vand.u32 %v481, 4294901760
    %483 = vmatpush1.msra.mxu0 %v482
    %484 = vmatprep.subr.mxu0 0.0
    %485 = vmatpush2.msra.mxu0 0.0
    %486 = vmatprep.subr.mxu0 0.0
    %487 = vmatpush2.msra.mxu0 0.0
    %488 = vmatprep.subr.mxu0 0.0
    %489 = vmatpush2.msra.mxu0 0.0
    %490 = vmatprep.subr.mxu0 0.0
    %491 = vmatpush2.msra.mxu0 0.0
    %492 = vmatprep.subr.mxu0 0.0
    %493 = vmatpush2.msra.mxu0 0.0
    %494 = vmatprep.subr.mxu0 0.0
    %495 = vmatpush2.msra.mxu0 0.0
    %496 = vmatprep.subr.mxu0 0.0
    %497 = vmatpush2.msra.mxu0 0.0
    %498 = vmatprep.subr.mxu0 0.0
    %499 = vmatpush2.msra.mxu0 0.0
    %500 = vmatprep.subr.mxu0 0.0
    %501 = vmatpush2.msra.mxu0 0.0
    %502 = vmatprep.subr.mxu0 0.0
    %503 = vmatpush2.msra.mxu0 0.0
    %504 = vmatprep.subr.mxu0 0.0
    %505 = vmatpush2.msra.mxu0 0.0
    %506 = vmatprep.subr.mxu0 0.0
    %507 = vmatpush2.msra.mxu0 0.0
    %508 = vmatprep.subr.mxu0 0.0
    %509 = vmatpush2.msra.mxu0 0.0
    %510 = vmatprep.subr.mxu0 0.0
    %511 = vmatpush2.msra.mxu0 0.0
    %512 = vmatprep.subr.mxu0 0.0
    %513 = vmatpush2.msra.mxu0 0.0
    %514 = vmatprep.subr.mxu0 0.0
    %515 = vmatpush2.msra.mxu0 0.0
    %516 = vmatprep.mubr.f32.mxu0 0.0
    %v517 = vand.u32 %v115, 4294901760
    %518 = vmatmul.mubr.f32.gmra.mxu0 %v517
    %v519 = vpop.f32.mrf.mxu0
    %v520 = vadd.f32 %v219, %v519
    %v521 = vpop.f32.mrf.mxu0
    %522 = vmatprep.mubr.f32.mxu0 0.0
    %v523 = vand.u32 %v116, 4294901760
    %524 = vmatmul.mubr.f32.gmra.mxu0 %v523
    %v525 = vpop.f32.mrf.mxu0
    %v526 = vadd.f32 %v229, %v525
    %v527 = vpop.f32.mrf.mxu0
    %528 = vmatprep.mubr.f32.mxu0 0.0
    %v529 = vand.u32 %v117, 4294901760
    %530 = vmatmul.mubr.f32.gmra.mxu0 %v529
    %v531 = vpop.f32.mrf.mxu0
    %v532 = vadd.f32 %v239, %v531
    %v533 = vpop.f32.mrf.mxu0
    %534 = vmatprep.mubr.f32.mxu0 0.0
    %v535 = vand.u32 %v118, 4294901760
    %536 = vmatmul.mubr.f32.gmra.mxu0 %v535
    %v537 = vpop.f32.mrf.mxu0
    %v538 = vadd.f32 %v249, %v537
    %v539 = vpop.f32.mrf.mxu0
    %540 = vmatprep.mubr.f32.mxu0 0.0
    %v541 = vand.u32 %v119, 4294901760
    %542 = vmatmul.mubr.f32.gmra.mxu0 %v541
    %v543 = vpop.f32.mrf.mxu0
    %v544 = vadd.f32 %v259, %v543
    %v545 = vpop.f32.mrf.mxu0
    %546 = vmatprep.mubr.f32.mxu0 0.0
    %v547 = vand.u32 %v120, 4294901760
    %548 = vmatmul.mubr.f32.gmra.mxu0 %v547
    %v549 = vpop.f32.mrf.mxu0
    %v550 = vadd.f32 %v269, %v549
    %v551 = vpop.f32.mrf.mxu0
    %552 = vmatprep.mubr.f32.mxu0 0.0
    %v553 = vand.u32 %v121, 4294901760
    %554 = vmatmul.mubr.f32.gmra.mxu0 %v553
    %v555 = vpop.f32.mrf.mxu0
    %v556 = vadd.f32 %v279, %v555
    %v557 = vpop.f32.mrf.mxu0
    %558 = vmatprep.mubr.f32.mxu0 0.0
    %v559 = vand.u32 %v122, 4294901760
    %560 = vmatmul.mubr.f32.gmra.mxu0 %v559
    %v561 = vpop.f32.mrf.mxu0
    %v562 = vadd.f32 %v289, %v561
    %v563 = vpop.f32.mrf.mxu0
    %564 = vmatprep.mubr.f32.mxu0 0.0
    %v565 = vand.u32 %v123, 4294901760
    %566 = vmatmul.mubr.f32.gmra.mxu0 %v565
    %v567 = vpop.f32.mrf.mxu0
    %v568 = vadd.f32 %v299, %v567
    %v569 = vpop.f32.mrf.mxu0
    %570 = vmatprep.mubr.f32.mxu0 0.0
    %v571 = vand.u32 %v124, 4294901760
    %572 = vmatmul.mubr.f32.gmra.mxu0 %v571
    %v573 = vpop.f32.mrf.mxu0
    %v574 = vadd.f32 %v309, %v573
    %v575 = vpop.f32.mrf.mxu0
    %576 = vmatprep.mubr.f32.mxu0 0.0
    %v577 = vand.u32 %v125, 4294901760
    %578 = vmatmul.mubr.f32.gmra.mxu0 %v577
    %v579 = vpop.f32.mrf.mxu0
    %v580 = vadd.f32 %v319, %v579
    %v581 = vpop.f32.mrf.mxu0
    %582 = vmatprep.mubr.f32.mxu0 0.0
    %v583 = vand.u32 %v126, 4294901760
    %584 = vmatmul.mubr.f32.gmra.mxu0 %v583
    %v585 = vpop.f32.mrf.mxu0
    %v586 = vadd.f32 %v329, %v585
    %v587 = vpop.f32.mrf.mxu0
    %588 = vmatprep.mubr.f32.mxu0 0.0
    %v589 = vand.u32 %v127, 4294901760
    %590 = vmatmul.mubr.f32.gmra.mxu0 %v589
    %v591 = vpop.f32.mrf.mxu0
    %v592 = vadd.f32 %v339, %v591
    %v593 = vpop.f32.mrf.mxu0
    %594 = vmatprep.mubr.f32.mxu0 0.0
    %v595 = vand.u32 %v128, 4294901760
    %596 = vmatmul.mubr.f32.gmra.mxu0 %v595
    %v597 = vpop.f32.mrf.mxu0
    %v598 = vadd.f32 %v349, %v597
    %v599 = vpop.f32.mrf.mxu0
    %600 = vmatprep.mubr.f32.mxu0 0.0
    %v601 = vand.u32 %v129, 4294901760
    %602 = vmatmul.mubr.f32.gmra.mxu0 %v601
    %v603 = vpop.f32.mrf.mxu0
    %v604 = vadd.f32 %v359, %v603
    %v605 = vpop.f32.mrf.mxu0
    %606 = vmatprep.mubr.f32.mxu0 0.0
    %v607 = vand.u32 %v130, 4294901760
    %608 = vmatmul.mubr.f32.gmra.mxu0 %v607
    %v609 = vpop.f32.mrf.mxu0
    %v610 = vadd.f32 %v369, %v609
    %v611 = vpop.f32.mrf.mxu0
    %612 = vdwg.mxu0
    %613 = vmatprep.subr.mxu0 0.0
    %v614 = vand.u32 %v114, 4294901760
    %v615 = vsub.f32 %v114, %v614
    %616 = vmatpush1.msra.mxu0 %v615
    %617 = vmatprep.subr.mxu0 0.0
    %v618 = vand.u32 %v113, 4294901760
    %v619 = vsub.f32 %v113, %v618
    %620 = vmatpush1.msra.mxu0 %v619
    %621 = vmatprep.subr.mxu0 0.0
    %v622 = vand.u32 %v112, 4294901760
    %v623 = vsub.f32 %v112, %v622
    %624 = vmatpush1.msra.mxu0 %v623
    %625 = vmatprep.subr.mxu0 0.0
    %v626 = vand.u32 %v111, 4294901760
    %v627 = vsub.f32 %v111, %v626
    %628 = vmatpush1.msra.mxu0 %v627
    %629 = vmatprep.subr.mxu0 0.0
    %v630 = vand.u32 %v110, 4294901760
    %v631 = vsub.f32 %v110, %v630
    %632 = vmatpush1.msra.mxu0 %v631
    %633 = vmatprep.subr.mxu0 0.0
    %v634 = vand.u32 %v109, 4294901760
    %v635 = vsub.f32 %v109, %v634
    %636 = vmatpush1.msra.mxu0 %v635
    %637 = vmatprep.subr.mxu0 0.0
    %v638 = vand.u32 %v108, 4294901760
    %v639 = vsub.f32 %v108, %v638
    %640 = vmatpush1.msra.mxu0 %v639
    %641 = vmatprep.subr.mxu0 0.0
    %v642 = vand.u32 %v107, 4294901760
    %v643 = vsub.f32 %v107, %v642
    %644 = vmatpush1.msra.mxu0 %v643
    %645 = vmatprep.subr.mxu0 0.0
    %v646 = vand.u32 %v106, 4294901760
    %v647 = vsub.f32 %v106, %v646
    %648 = vmatpush1.msra.mxu0 %v647
    %649 = vmatprep.subr.mxu0 0.0
    %v650 = vand.u32 %v105, 4294901760
    %v651 = vsub.f32 %v105, %v650
    %652 = vmatpush1.msra.mxu0 %v651
    %653 = vmatprep.subr.mxu0 0.0
    %v654 = vand.u32 %v104, 4294901760
    %v655 = vsub.f32 %v104, %v654
    %656 = vmatpush1.msra.mxu0 %v655
    %657 = vmatprep.subr.mxu0 0.0
    %v658 = vand.u32 %v103, 4294901760
    %v659 = vsub.f32 %v103, %v658
    %660 = vmatpush1.msra.mxu0 %v659
    %661 = vmatprep.subr.mxu0 0.0
    %v662 = vand.u32 %v102, 4294901760
    %v663 = vsub.f32 %v102, %v662
    %664 = vmatpush1.msra.mxu0 %v663
    %665 = vmatprep.subr.mxu0 0.0
    %v666 = vand.u32 %v101, 4294901760
    %v667 = vsub.f32 %v101, %v666
    %668 = vmatpush1.msra.mxu0 %v667
    %669 = vmatprep.subr.mxu0 0.0
    %v670 = vand.u32 %v100, 4294901760
    %v671 = vsub.f32 %v100, %v670
    %672 = vmatpush1.msra.mxu0 %v671
    %673 = vmatprep.subr.mxu0 0.0
    %v674 = vand.u32 %v99, 4294901760
    %v675 = vsub.f32 %v99, %v674
    %676 = vmatpush1.msra.mxu0 %v675
    %677 = vmatprep.subr.mxu0 0.0
    %678 = vmatpush2.msra.mxu0 0.0
    %679 = vmatprep.subr.mxu0 0.0
    %680 = vmatpush2.msra.mxu0 0.0
    %681 = vmatprep.subr.mxu0 0.0
    %682 = vmatpush2.msra.mxu0 0.0
    %683 = vmatprep.subr.mxu0 0.0
    %684 = vmatpush2.msra.mxu0 0.0
    %685 = vmatprep.subr.mxu0 0.0
    %686 = vmatpush2.msra.mxu0 0.0
    %687 = vmatprep.subr.mxu0 0.0
    %688 = vmatpush2.msra.mxu0 0.0
    %689 = vmatprep.subr.mxu0 0.0
    %690 = vmatpush2.msra.mxu0 0.0
    %691 = vmatprep.subr.mxu0 0.0
    %692 = vmatpush2.msra.mxu0 0.0
    %693 = vmatprep.subr.mxu0 0.0
    %694 = vmatpush2.msra.mxu0 0.0
    %695 = vmatprep.subr.mxu0 0.0
    %696 = vmatpush2.msra.mxu0 0.0
    %697 = vmatprep.subr.mxu0 0.0
    %698 = vmatpush2.msra.mxu0 0.0
    %699 = vmatprep.subr.mxu0 0.0
    %700 = vmatpush2.msra.mxu0 0.0
    %701 = vmatprep.subr.mxu0 0.0
    %702 = vmatpush2.msra.mxu0 0.0
    %703 = vmatprep.subr.mxu0 0.0
    %704 = vmatpush2.msra.mxu0 0.0
    %705 = vmatprep.subr.mxu0 0.0
    %706 = vmatpush2.msra.mxu0 0.0
    %707 = vmatprep.subr.mxu0 0.0
    %708 = vmatpush2.msra.mxu0 0.0
    %709 = vmatprep.mubr.f32.mxu0 0.0
    %v710 = vand.u32 %v115, 4294901760
    %v711 = vsub.f32 %v115, %v710
    %712 = vmatmul.mubr.f32.gmra.mxu0 %v711
    %v713 = vpop.f32.mrf.mxu0
    %v714 = vadd.f32 %v520, %v713
    %v715 = vpop.f32.mrf.mxu0
    %716 = vmatprep.mubr.f32.mxu0 0.0
    %v717 = vand.u32 %v116, 4294901760
    %v718 = vsub.f32 %v116, %v717
    %719 = vmatmul.mubr.f32.gmra.mxu0 %v718
    %v720 = vpop.f32.mrf.mxu0
    %v721 = vadd.f32 %v526, %v720
    %v722 = vpop.f32.mrf.mxu0
    %723 = vmatprep.mubr.f32.mxu0 0.0
    %v724 = vand.u32 %v117, 4294901760
    %v725 = vsub.f32 %v117, %v724
    %726 = vmatmul.mubr.f32.gmra.mxu0 %v725
    %v727 = vpop.f32.mrf.mxu0
    %v728 = vadd.f32 %v532, %v727
    %v729 = vpop.f32.mrf.mxu0
    %730 = vmatprep.mubr.f32.mxu0 0.0
    %v731 = vand.u32 %v118, 4294901760
    %v732 = vsub.f32 %v118, %v731
    %733 = vmatmul.mubr.f32.gmra.mxu0 %v732
    %v734 = vpop.f32.mrf.mxu0
    %v735 = vadd.f32 %v538, %v734
    %v736 = vpop.f32.mrf.mxu0
    %737 = vmatprep.mubr.f32.mxu0 0.0
    %v738 = vand.u32 %v119, 4294901760
    %v739 = vsub.f32 %v119, %v738
    %740 = vmatmul.mubr.f32.gmra.mxu0 %v739
    %v741 = vpop.f32.mrf.mxu0
    %v742 = vadd.f32 %v544, %v741
    %v743 = vpop.f32.mrf.mxu0
    %744 = vmatprep.mubr.f32.mxu0 0.0
    %v745 = vand.u32 %v120, 4294901760
    %v746 = vsub.f32 %v120, %v745
    %747 = vmatmul.mubr.f32.gmra.mxu0 %v746
    %v748 = vpop.f32.mrf.mxu0
    %v749 = vadd.f32 %v550, %v748
    %v750 = vpop.f32.mrf.mxu0
    %751 = vmatprep.mubr.f32.mxu0 0.0
    %v752 = vand.u32 %v121, 4294901760
    %v753 = vsub.f32 %v121, %v752
    %754 = vmatmul.mubr.f32.gmra.mxu0 %v753
    %v755 = vpop.f32.mrf.mxu0
    %v756 = vadd.f32 %v556, %v755
    %v757 = vpop.f32.mrf.mxu0
    %758 = vmatprep.mubr.f32.mxu0 0.0
    %v759 = vand.u32 %v122, 4294901760
    %v760 = vsub.f32 %v122, %v759
    %761 = vmatmul.mubr.f32.gmra.mxu0 %v760
    %v762 = vpop.f32.mrf.mxu0
    %v763 = vadd.f32 %v562, %v762
    %v764 = vpop.f32.mrf.mxu0
    %765 = vmatprep.mubr.f32.mxu0 0.0
    %v766 = vand.u32 %v123, 4294901760
    %v767 = vsub.f32 %v123, %v766
    %768 = vmatmul.mubr.f32.gmra.mxu0 %v767
    %v769 = vpop.f32.mrf.mxu0
    %v770 = vadd.f32 %v568, %v769
    %v771 = vpop.f32.mrf.mxu0
    %772 = vmatprep.mubr.f32.mxu0 0.0
    %v773 = vand.u32 %v124, 4294901760
    %v774 = vsub.f32 %v124, %v773
    %775 = vmatmul.mubr.f32.gmra.mxu0 %v774
    %v776 = vpop.f32.mrf.mxu0
    %v777 = vadd.f32 %v574, %v776
    %v778 = vpop.f32.mrf.mxu0
    %779 = vmatprep.mubr.f32.mxu0 0.0
    %v780 = vand.u32 %v125, 4294901760
    %v781 = vsub.f32 %v125, %v780
    %782 = vmatmul.mubr.f32.gmra.mxu0 %v781
    %v783 = vpop.f32.mrf.mxu0
    %v784 = vadd.f32 %v580, %v783
    %v785 = vpop.f32.mrf.mxu0
    %786 = vmatprep.mubr.f32.mxu0 0.0
    %v787 = vand.u32 %v126, 4294901760
    %v788 = vsub.f32 %v126, %v787
    %789 = vmatmul.mubr.f32.gmra.mxu0 %v788
    %v790 = vpop.f32.mrf.mxu0
    %v791 = vadd.f32 %v586, %v790
    %v792 = vpop.f32.mrf.mxu0
    %793 = vmatprep.mubr.f32.mxu0 0.0
    %v794 = vand.u32 %v127, 4294901760
    %v795 = vsub.f32 %v127, %v794
    %796 = vmatmul.mubr.f32.gmra.mxu0 %v795
    %v797 = vpop.f32.mrf.mxu0
    %v798 = vadd.f32 %v592, %v797
    %v799 = vpop.f32.mrf.mxu0
    %800 = vmatprep.mubr.f32.mxu0 0.0
    %v801 = vand.u32 %v128, 4294901760
    %v802 = vsub.f32 %v128, %v801
    %803 = vmatmul.mubr.f32.gmra.mxu0 %v802
    %v804 = vpop.f32.mrf.mxu0
    %v805 = vadd.f32 %v598, %v804
    %v806 = vpop.f32.mrf.mxu0
    %807 = vmatprep.mubr.f32.mxu0 0.0
    %v808 = vand.u32 %v129, 4294901760
    %v809 = vsub.f32 %v129, %v808
    %810 = vmatmul.mubr.f32.gmra.mxu0 %v809
    %v811 = vpop.f32.mrf.mxu0
    %v812 = vadd.f32 %v604, %v811
    %v813 = vpop.f32.mrf.mxu0
    %814 = vmatprep.mubr.f32.mxu0 0.0
    %v815 = vand.u32 %v130, 4294901760
    %v816 = vsub.f32 %v130, %v815
    %817 = vmatmul.mubr.f32.gmra.mxu0 %v816
    %v818 = vpop.f32.mrf.mxu0
    %v819 = vadd.f32 %v610, %v818
    %v820 = vpop.f32.mrf.mxu0
    %821 = vdwg.mxu0
    %822 = vmatprep.subr.mxu0 0.0
    %v823 = vand.u32 %v114, 4294901760
    %824 = vmatpush1.msra.mxu0 %v823
    %825 = vmatprep.subr.mxu0 0.0
    %v826 = vand.u32 %v113, 4294901760
    %827 = vmatpush1.msra.mxu0 %v826
    %828 = vmatprep.subr.mxu0 0.0
    %v829 = vand.u32 %v112, 4294901760
    %830 = vmatpush1.msra.mxu0 %v829
    %831 = vmatprep.subr.mxu0 0.0
    %v832 = vand.u32 %v111, 4294901760
    %833 = vmatpush1.msra.mxu0 %v832
    %834 = vmatprep.subr.mxu0 0.0
    %v835 = vand.u32 %v110, 4294901760
    %836 = vmatpush1.msra.mxu0 %v835
    %837 = vmatprep.subr.mxu0 0.0
    %v838 = vand.u32 %v109, 4294901760
    %839 = vmatpush1.msra.mxu0 %v838
    %840 = vmatprep.subr.mxu0 0.0
    %v841 = vand.u32 %v108, 4294901760
    %842 = vmatpush1.msra.mxu0 %v841
    %843 = vmatprep.subr.mxu0 0.0
    %v844 = vand.u32 %v107, 4294901760
    %845 = vmatpush1.msra.mxu0 %v844
    %846 = vmatprep.subr.mxu0 0.0
    %v847 = vand.u32 %v106, 4294901760
    %848 = vmatpush1.msra.mxu0 %v847
    %849 = vmatprep.subr.mxu0 0.0
    %v850 = vand.u32 %v105, 4294901760
    %851 = vmatpush1.msra.mxu0 %v850
    %852 = vmatprep.subr.mxu0 0.0
    %v853 = vand.u32 %v104, 4294901760
    %854 = vmatpush1.msra.mxu0 %v853
    %855 = vmatprep.subr.mxu0 0.0
    %v856 = vand.u32 %v103, 4294901760
    %857 = vmatpush1.msra.mxu0 %v856
    %858 = vmatprep.subr.mxu0 0.0
    %v859 = vand.u32 %v102, 4294901760
    %860 = vmatpush1.msra.mxu0 %v859
    %861 = vmatprep.subr.mxu0 0.0
    %v862 = vand.u32 %v101, 4294901760
    %863 = vmatpush1.msra.mxu0 %v862
    %864 = vmatprep.subr.mxu0 0.0
    %v865 = vand.u32 %v100, 4294901760
    %866 = vmatpush1.msra.mxu0 %v865
    %867 = vmatprep.subr.mxu0 0.0
    %v868 = vand.u32 %v99, 4294901760
    %869 = vmatpush1.msra.mxu0 %v868
    %870 = vmatprep.subr.mxu0 0.0
    %871 = vmatpush2.msra.mxu0 0.0
    %872 = vmatprep.subr.mxu0 0.0
    %873 = vmatpush2.msra.mxu0 0.0
    %874 = vmatprep.subr.mxu0 0.0
    %875 = vmatpush2.msra.mxu0 0.0
    %876 = vmatprep.subr.mxu0 0.0
    %877 = vmatpush2.msra.mxu0 0.0
    %878 = vmatprep.subr.mxu0 0.0
    %879 = vmatpush2.msra.mxu0 0.0
    %880 = vmatprep.subr.mxu0 0.0
    %881 = vmatpush2.msra.mxu0 0.0
    %882 = vmatprep.subr.mxu0 0.0
    %883 = vmatpush2.msra.mxu0 0.0
    %884 = vmatprep.subr.mxu0 0.0
    %885 = vmatpush2.msra.mxu0 0.0
    %886 = vmatprep.subr.mxu0 0.0
    %887 = vmatpush2.msra.mxu0 0.0
    %888 = vmatprep.subr.mxu0 0.0
    %889 = vmatpush2.msra.mxu0 0.0
    %890 = vmatprep.subr.mxu0 0.0
    %891 = vmatpush2.msra.mxu0 0.0
    %892 = vmatprep.subr.mxu0 0.0
    %893 = vmatpush2.msra.mxu0 0.0
    %894 = vmatprep.subr.mxu0 0.0
    %895 = vmatpush2.msra.mxu0 0.0
    %896 = vmatprep.subr.mxu0 0.0
    %897 = vmatpush2.msra.mxu0 0.0
    %898 = vmatprep.subr.mxu0 0.0
    %899 = vmatpush2.msra.mxu0 0.0
    %900 = vmatprep.subr.mxu0 0.0
    %901 = vmatpush2.msra.mxu0 0.0
    %902 = vmatprep.mubr.f32.mxu0 0.0
    %v903 = vand.u32 %v115, 4294901760
    %v904 = vsub.f32 %v115, %v903
    %v905 = vand.u32 %v904, 4294901760
    %906 = vmatmul.mubr.f32.gmra.mxu0 %v905
    %v907 = vpop.f32.mrf.mxu0
    %v908 = vadd.f32 %v714, %v907
    %v909 = vpop.f32.mrf.mxu0
    %910 = vmatprep.mubr.f32.mxu0 0.0
    %v911 = vand.u32 %v116, 4294901760
    %v912 = vsub.f32 %v116, %v911
    %v913 = vand.u32 %v912, 4294901760
    %914 = vmatmul.mubr.f32.gmra.mxu0 %v913
    %v915 = vpop.f32.mrf.mxu0
    %v916 = vadd.f32 %v721, %v915
    %v917 = vpop.f32.mrf.mxu0
    %918 = vmatprep.mubr.f32.mxu0 0.0
    %v919 = vand.u32 %v117, 4294901760
    %v920 = vsub.f32 %v117, %v919
    %v921 = vand.u32 %v920, 4294901760
    %922 = vmatmul.mubr.f32.gmra.mxu0 %v921
    %v923 = vpop.f32.mrf.mxu0
    %v924 = vadd.f32 %v728, %v923
    %v925 = vpop.f32.mrf.mxu0
    %926 = vmatprep.mubr.f32.mxu0 0.0
    %v927 = vand.u32 %v118, 4294901760
    %v928 = vsub.f32 %v118, %v927
    %v929 = vand.u32 %v928, 4294901760
    %930 = vmatmul.mubr.f32.gmra.mxu0 %v929
    %v931 = vpop.f32.mrf.mxu0
    %v932 = vadd.f32 %v735, %v931
    %v933 = vpop.f32.mrf.mxu0
    %934 = vmatprep.mubr.f32.mxu0 0.0
    %v935 = vand.u32 %v119, 4294901760
    %v936 = vsub.f32 %v119, %v935
    %v937 = vand.u32 %v936, 4294901760
    %938 = vmatmul.mubr.f32.gmra.mxu0 %v937
    %v939 = vpop.f32.mrf.mxu0
    %v940 = vadd.f32 %v742, %v939
    %v941 = vpop.f32.mrf.mxu0
    %942 = vmatprep.mubr.f32.mxu0 0.0
    %v943 = vand.u32 %v120, 4294901760
    %v944 = vsub.f32 %v120, %v943
    %v945 = vand.u32 %v944, 4294901760
    %946 = vmatmul.mubr.f32.gmra.mxu0 %v945
    %v947 = vpop.f32.mrf.mxu0
    %v948 = vadd.f32 %v749, %v947
    %v949 = vpop.f32.mrf.mxu0
    %950 = vmatprep.mubr.f32.mxu0 0.0
    %v951 = vand.u32 %v121, 4294901760
    %v952 = vsub.f32 %v121, %v951
    %v953 = vand.u32 %v952, 4294901760
    %954 = vmatmul.mubr.f32.gmra.mxu0 %v953
    %v955 = vpop.f32.mrf.mxu0
    %v956 = vadd.f32 %v756, %v955
    %v957 = vpop.f32.mrf.mxu0
    %958 = vmatprep.mubr.f32.mxu0 0.0
    %v959 = vand.u32 %v122, 4294901760
    %v960 = vsub.f32 %v122, %v959
    %v961 = vand.u32 %v960, 4294901760
    %962 = vmatmul.mubr.f32.gmra.mxu0 %v961
    %v963 = vpop.f32.mrf.mxu0
    %v964 = vadd.f32 %v763, %v963
    %v965 = vpop.f32.mrf.mxu0
    %966 = vmatprep.mubr.f32.mxu0 0.0
    %v967 = vand.u32 %v123, 4294901760
    %v968 = vsub.f32 %v123, %v967
    %v969 = vand.u32 %v968, 4294901760
    %970 = vmatmul.mubr.f32.gmra.mxu0 %v969
    %v971 = vpop.f32.mrf.mxu0
    %v972 = vadd.f32 %v770, %v971
    %v973 = vpop.f32.mrf.mxu0
    %974 = vmatprep.mubr.f32.mxu0 0.0
    %v975 = vand.u32 %v124, 4294901760
    %v976 = vsub.f32 %v124, %v975
    %v977 = vand.u32 %v976, 4294901760
    %978 = vmatmul.mubr.f32.gmra.mxu0 %v977
    %v979 = vpop.f32.mrf.mxu0
    %v980 = vadd.f32 %v777, %v979
    %v981 = vpop.f32.mrf.mxu0
    %982 = vmatprep.mubr.f32.mxu0 0.0
    %v983 = vand.u32 %v125, 4294901760
    %v984 = vsub.f32 %v125, %v983
    %v985 = vand.u32 %v984, 4294901760
    %986 = vmatmul.mubr.f32.gmra.mxu0 %v985
    %v987 = vpop.f32.mrf.mxu0
    %v988 = vadd.f32 %v784, %v987
    %v989 = vpop.f32.mrf.mxu0
    %990 = vmatprep.mubr.f32.mxu0 0.0
    %v991 = vand.u32 %v126, 4294901760
    %v992 = vsub.f32 %v126, %v991
    %v993 = vand.u32 %v992, 4294901760
    %994 = vmatmul.mubr.f32.gmra.mxu0 %v993
    %v995 = vpop.f32.mrf.mxu0
    %v996 = vadd.f32 %v791, %v995
    %v997 = vpop.f32.mrf.mxu0
    %998 = vmatprep.mubr.f32.mxu0 0.0
    %v999 = vand.u32 %v127, 4294901760
    %v1000 = vsub.f32 %v127, %v999
    %v1001 = vand.u32 %v1000, 4294901760
    %1002 = vmatmul.mubr.f32.gmra.mxu0 %v1001
    %v1003 = vpop.f32.mrf.mxu0
    %v1004 = vadd.f32 %v798, %v1003
    %v1005 = vpop.f32.mrf.mxu0
    %1006 = vmatprep.mubr.f32.mxu0 0.0
    %v1007 = vand.u32 %v128, 4294901760
    %v1008 = vsub.f32 %v128, %v1007
    %v1009 = vand.u32 %v1008, 4294901760
    %1010 = vmatmul.mubr.f32.gmra.mxu0 %v1009
    %v1011 = vpop.f32.mrf.mxu0
    %v1012 = vadd.f32 %v805, %v1011
    %v1013 = vpop.f32.mrf.mxu0
    %1014 = vmatprep.mubr.f32.mxu0 0.0
    %v1015 = vand.u32 %v129, 4294901760
    %v1016 = vsub.f32 %v129, %v1015
    %v1017 = vand.u32 %v1016, 4294901760
    %1018 = vmatmul.mubr.f32.gmra.mxu0 %v1017
    %v1019 = vpop.f32.mrf.mxu0
    %v1020 = vadd.f32 %v812, %v1019
    %v1021 = vpop.f32.mrf.mxu0
    %1022 = vmatprep.mubr.f32.mxu0 0.0
    %v1023 = vand.u32 %v130, 4294901760
    %v1024 = vsub.f32 %v130, %v1023
    %v1025 = vand.u32 %v1024, 4294901760
    %1026 = vmatmul.mubr.f32.gmra.mxu0 %v1025
    %v1027 = vpop.f32.mrf.mxu0
    %v1028 = vadd.f32 %v819, %v1027
    %v1029 = vpop.f32.mrf.mxu0
    %1030 = vdwg.mxu0
    %1031 = vmatprep.subr.mxu0 0.0
    %v1032 = vand.u32 %v114, 4294901760
    %v1033 = vsub.f32 %v114, %v1032
    %v1034 = vand.u32 %v1033, 4294901760
    %1035 = vmatpush1.msra.mxu0 %v1034
    %1036 = vmatprep.subr.mxu0 0.0
    %v1037 = vand.u32 %v113, 4294901760
    %v1038 = vsub.f32 %v113, %v1037
    %v1039 = vand.u32 %v1038, 4294901760
    %1040 = vmatpush1.msra.mxu0 %v1039
    %1041 = vmatprep.subr.mxu0 0.0
    %v1042 = vand.u32 %v112, 4294901760
    %v1043 = vsub.f32 %v112, %v1042
    %v1044 = vand.u32 %v1043, 4294901760
    %1045 = vmatpush1.msra.mxu0 %v1044
    %1046 = vmatprep.subr.mxu0 0.0
    %v1047 = vand.u32 %v111, 4294901760
    %v1048 = vsub.f32 %v111, %v1047
    %v1049 = vand.u32 %v1048, 4294901760
    %1050 = vmatpush1.msra.mxu0 %v1049
    %1051 = vmatprep.subr.mxu0 0.0
    %v1052 = vand.u32 %v110, 4294901760
    %v1053 = vsub.f32 %v110, %v1052
    %v1054 = vand.u32 %v1053, 4294901760
    %1055 = vmatpush1.msra.mxu0 %v1054
    %1056 = vmatprep.subr.mxu0 0.0
    %v1057 = vand.u32 %v109, 4294901760
    %v1058 = vsub.f32 %v109, %v1057
    %v1059 = vand.u32 %v1058, 4294901760
    %1060 = vmatpush1.msra.mxu0 %v1059
    %1061 = vmatprep.subr.mxu0 0.0
    %v1062 = vand.u32 %v108, 4294901760
    %v1063 = vsub.f32 %v108, %v1062
    %v1064 = vand.u32 %v1063, 4294901760
    %1065 = vmatpush1.msra.mxu0 %v1064
    %1066 = vmatprep.subr.mxu0 0.0
    %v1067 = vand.u32 %v107, 4294901760
    %v1068 = vsub.f32 %v107, %v1067
    %v1069 = vand.u32 %v1068, 4294901760
    %1070 = vmatpush1.msra.mxu0 %v1069
    %1071 = vmatprep.subr.mxu0 0.0
    %v1072 = vand.u32 %v106, 4294901760
    %v1073 = vsub.f32 %v106, %v1072
    %v1074 = vand.u32 %v1073, 4294901760
    %1075 = vmatpush1.msra.mxu0 %v1074
    %1076 = vmatprep.subr.mxu0 0.0
    %v1077 = vand.u32 %v105, 4294901760
    %v1078 = vsub.f32 %v105, %v1077
    %v1079 = vand.u32 %v1078, 4294901760
    %1080 = vmatpush1.msra.mxu0 %v1079
    %1081 = vmatprep.subr.mxu0 0.0
    %v1082 = vand.u32 %v104, 4294901760
    %v1083 = vsub.f32 %v104, %v1082
    %v1084 = vand.u32 %v1083, 4294901760
    %1085 = vmatpush1.msra.mxu0 %v1084
    %1086 = vmatprep.subr.mxu0 0.0
    %v1087 = vand.u32 %v103, 4294901760
    %v1088 = vsub.f32 %v103, %v1087
    %v1089 = vand.u32 %v1088, 4294901760
    %1090 = vmatpush1.msra.mxu0 %v1089
    %1091 = vmatprep.subr.mxu0 0.0
    %v1092 = vand.u32 %v102, 4294901760
    %v1093 = vsub.f32 %v102, %v1092
    %v1094 = vand.u32 %v1093, 4294901760
    %1095 = vmatpush1.msra.mxu0 %v1094
    %1096 = vmatprep.subr.mxu0 0.0
    %v1097 = vand.u32 %v101, 4294901760
    %v1098 = vsub.f32 %v101, %v1097
    %v1099 = vand.u32 %v1098, 4294901760
    %1100 = vmatpush1.msra.mxu0 %v1099
    %1101 = vmatprep.subr.mxu0 0.0
    %v1102 = vand.u32 %v100, 4294901760
    %v1103 = vsub.f32 %v100, %v1102
    %v1104 = vand.u32 %v1103, 4294901760
    %1105 = vmatpush1.msra.mxu0 %v1104
    %1106 = vmatprep.subr.mxu0 0.0
    %v1107 = vand.u32 %v99, 4294901760
    %v1108 = vsub.f32 %v99, %v1107
    %v1109 = vand.u32 %v1108, 4294901760
    %1110 = vmatpush1.msra.mxu0 %v1109
    %1111 = vmatprep.subr.mxu0 0.0
    %1112 = vmatpush2.msra.mxu0 0.0
    %1113 = vmatprep.subr.mxu0 0.0
    %1114 = vmatpush2.msra.mxu0 0.0
    %1115 = vmatprep.subr.mxu0 0.0
    %1116 = vmatpush2.msra.mxu0 0.0
    %1117 = vmatprep.subr.mxu0 0.0
    %1118 = vmatpush2.msra.mxu0 0.0
    %1119 = vmatprep.subr.mxu0 0.0
    %1120 = vmatpush2.msra.mxu0 0.0
    %1121 = vmatprep.subr.mxu0 0.0
    %1122 = vmatpush2.msra.mxu0 0.0
    %1123 = vmatprep.subr.mxu0 0.0
    %1124 = vmatpush2.msra.mxu0 0.0
    %1125 = vmatprep.subr.mxu0 0.0
    %1126 = vmatpush2.msra.mxu0 0.0
    %1127 = vmatprep.subr.mxu0 0.0
    %1128 = vmatpush2.msra.mxu0 0.0
    %1129 = vmatprep.subr.mxu0 0.0
    %1130 = vmatpush2.msra.mxu0 0.0
    %1131 = vmatprep.subr.mxu0 0.0
    %1132 = vmatpush2.msra.mxu0 0.0
    %1133 = vmatprep.subr.mxu0 0.0
    %1134 = vmatpush2.msra.mxu0 0.0
    %1135 = vmatprep.subr.mxu0 0.0
    %1136 = vmatpush2.msra.mxu0 0.0
    %1137 = vmatprep.subr.mxu0 0.0
    %1138 = vmatpush2.msra.mxu0 0.0
    %1139 = vmatprep.subr.mxu0 0.0
    %1140 = vmatpush2.msra.mxu0 0.0
    %1141 = vmatprep.subr.mxu0 0.0
    %1142 = vmatpush2.msra.mxu0 0.0
    %1143 = vmatprep.mubr.f32.mxu0 0.0
    %v1144 = vand.u32 %v115, 4294901760
    %1145 = vmatmul.mubr.f32.gmra.mxu0 %v1144
    %v1146 = vpop.f32.mrf.mxu0
    %v1147 = vadd.f32 %v908, %v1146
    %v1148 = vpop.f32.mrf.mxu0
    %1149 = vmatprep.mubr.f32.mxu0 0.0
    %v1150 = vand.u32 %v116, 4294901760
    %1151 = vmatmul.mubr.f32.gmra.mxu0 %v1150
    %v1152 = vpop.f32.mrf.mxu0
    %v1153 = vadd.f32 %v916, %v1152
    %v1154 = vpop.f32.mrf.mxu0
    %1155 = vmatprep.mubr.f32.mxu0 0.0
    %v1156 = vand.u32 %v117, 4294901760
    %1157 = vmatmul.mubr.f32.gmra.mxu0 %v1156
    %v1158 = vpop.f32.mrf.mxu0
    %v1159 = vadd.f32 %v924, %v1158
    %v1160 = vpop.f32.mrf.mxu0
    %1161 = vmatprep.mubr.f32.mxu0 0.0
    %v1162 = vand.u32 %v118, 4294901760
    %1163 = vmatmul.mubr.f32.gmra.mxu0 %v1162
    %v1164 = vpop.f32.mrf.mxu0
    %v1165 = vadd.f32 %v932, %v1164
    %v1166 = vpop.f32.mrf.mxu0
    %1167 = vmatprep.mubr.f32.mxu0 0.0
    %v1168 = vand.u32 %v119, 4294901760
    %1169 = vmatmul.mubr.f32.gmra.mxu0 %v1168
    %v1170 = vpop.f32.mrf.mxu0
    %v1171 = vadd.f32 %v940, %v1170
    %v1172 = vpop.f32.mrf.mxu0
    %1173 = vmatprep.mubr.f32.mxu0 0.0
    %v1174 = vand.u32 %v120, 4294901760
    %1175 = vmatmul.mubr.f32.gmra.mxu0 %v1174
    %v1176 = vpop.f32.mrf.mxu0
    %v1177 = vadd.f32 %v948, %v1176
    %v1178 = vpop.f32.mrf.mxu0
    %1179 = vmatprep.mubr.f32.mxu0 0.0
    %v1180 = vand.u32 %v121, 4294901760
    %1181 = vmatmul.mubr.f32.gmra.mxu0 %v1180
    %v1182 = vpop.f32.mrf.mxu0
    %v1183 = vadd.f32 %v956, %v1182
    %v1184 = vpop.f32.mrf.mxu0
    %1185 = vmatprep.mubr.f32.mxu0 0.0
    %v1186 = vand.u32 %v122, 4294901760
    %1187 = vmatmul.mubr.f32.gmra.mxu0 %v1186
    %v1188 = vpop.f32.mrf.mxu0
    %v1189 = vadd.f32 %v964, %v1188
    %v1190 = vpop.f32.mrf.mxu0
    %1191 = vmatprep.mubr.f32.mxu0 0.0
    %v1192 = vand.u32 %v123, 4294901760
    %1193 = vmatmul.mubr.f32.gmra.mxu0 %v1192
    %v1194 = vpop.f32.mrf.mxu0
    %v1195 = vadd.f32 %v972, %v1194
    %v1196 = vpop.f32.mrf.mxu0
    %1197 = vmatprep.mubr.f32.mxu0 0.0
    %v1198 = vand.u32 %v124, 4294901760
    %1199 = vmatmul.mubr.f32.gmra.mxu0 %v1198
    %v1200 = vpop.f32.mrf.mxu0
    %v1201 = vadd.f32 %v980, %v1200
    %v1202 = vpop.f32.mrf.mxu0
    %1203 = vmatprep.mubr.f32.mxu0 0.0
    %v1204 = vand.u32 %v125, 4294901760
    %1205 = vmatmul.mubr.f32.gmra.mxu0 %v1204
    %v1206 = vpop.f32.mrf.mxu0
    %v1207 = vadd.f32 %v988, %v1206
    %v1208 = vpop.f32.mrf.mxu0
    %1209 = vmatprep.mubr.f32.mxu0 0.0
    %v1210 = vand.u32 %v126, 4294901760
    %1211 = vmatmul.mubr.f32.gmra.mxu0 %v1210
    %v1212 = vpop.f32.mrf.mxu0
    %v1213 = vadd.f32 %v996, %v1212
    %v1214 = vpop.f32.mrf.mxu0
    %1215 = vmatprep.mubr.f32.mxu0 0.0
    %v1216 = vand.u32 %v127, 4294901760
    %1217 = vmatmul.mubr.f32.gmra.mxu0 %v1216
    %v1218 = vpop.f32.mrf.mxu0
    %v1219 = vadd.f32 %v1004, %v1218
    %v1220 = vpop.f32.mrf.mxu0
    %1221 = vmatprep.mubr.f32.mxu0 0.0
    %v1222 = vand.u32 %v128, 4294901760
    %1223 = vmatmul.mubr.f32.gmra.mxu0 %v1222
    %v1224 = vpop.f32.mrf.mxu0
    %v1225 = vadd.f32 %v1012, %v1224
    %v1226 = vpop.f32.mrf.mxu0
    %1227 = vmatprep.mubr.f32.mxu0 0.0
    %v1228 = vand.u32 %v129, 4294901760
    %1229 = vmatmul.mubr.f32.gmra.mxu0 %v1228
    %v1230 = vpop.f32.mrf.mxu0
    %v1231 = vadd.f32 %v1020, %v1230
    %v1232 = vpop.f32.mrf.mxu0
    %1233 = vmatprep.mubr.f32.mxu0 0.0
    %v1234 = vand.u32 %v130, 4294901760
    %1235 = vmatmul.mubr.f32.gmra.mxu0 %v1234
    %v1236 = vpop.f32.mrf.mxu0
    %v1237 = vadd.f32 %v1028, %v1236
    %v1238 = vpop.f32.mrf.mxu0
    %1239 = vdwg.mxu0
    %1240 = vmatprep.subr.mxu0 0.0
    %v1241 = vand.u32 %v114, 4294901760
    %1242 = vmatpush1.msra.mxu0 %v1241
    %1243 = vmatprep.subr.mxu0 0.0
    %v1244 = vand.u32 %v113, 4294901760
    %1245 = vmatpush1.msra.mxu0 %v1244
    %1246 = vmatprep.subr.mxu0 0.0
    %v1247 = vand.u32 %v112, 4294901760
    %1248 = vmatpush1.msra.mxu0 %v1247
    %1249 = vmatprep.subr.mxu0 0.0
    %v1250 = vand.u32 %v111, 4294901760
    %1251 = vmatpush1.msra.mxu0 %v1250
    %1252 = vmatprep.subr.mxu0 0.0
    %v1253 = vand.u32 %v110, 4294901760
    %1254 = vmatpush1.msra.mxu0 %v1253
    %1255 = vmatprep.subr.mxu0 0.0
    %v1256 = vand.u32 %v109, 4294901760
    %1257 = vmatpush1.msra.mxu0 %v1256
    %1258 = vmatprep.subr.mxu0 0.0
    %v1259 = vand.u32 %v108, 4294901760
    %1260 = vmatpush1.msra.mxu0 %v1259
    %1261 = vmatprep.subr.mxu0 0.0
    %v1262 = vand.u32 %v107, 4294901760
    %1263 = vmatpush1.msra.mxu0 %v1262
    %1264 = vmatprep.subr.mxu0 0.0
    %v1265 = vand.u32 %v106, 4294901760
    %1266 = vmatpush1.msra.mxu0 %v1265
    %1267 = vmatprep.subr.mxu0 0.0
    %v1268 = vand.u32 %v105, 4294901760
    %1269 = vmatpush1.msra.mxu0 %v1268
    %1270 = vmatprep.subr.mxu0 0.0
    %v1271 = vand.u32 %v104, 4294901760
    %1272 = vmatpush1.msra.mxu0 %v1271
    %1273 = vmatprep.subr.mxu0 0.0
    %v1274 = vand.u32 %v103, 4294901760
    %1275 = vmatpush1.msra.mxu0 %v1274
    %1276 = vmatprep.subr.mxu0 0.0
    %v1277 = vand.u32 %v102, 4294901760
    %1278 = vmatpush1.msra.mxu0 %v1277
    %1279 = vmatprep.subr.mxu0 0.0
    %v1280 = vand.u32 %v101, 4294901760
    %1281 = vmatpush1.msra.mxu0 %v1280
    %1282 = vmatprep.subr.mxu0 0.0
    %v1283 = vand.u32 %v100, 4294901760
    %1284 = vmatpush1.msra.mxu0 %v1283
    %1285 = vmatprep.subr.mxu0 0.0
    %v1286 = vand.u32 %v99, 4294901760
    %1287 = vmatpush1.msra.mxu0 %v1286
    %1288 = vmatprep.subr.mxu0 0.0
    %1289 = vmatpush2.msra.mxu0 0.0
    %1290 = vmatprep.subr.mxu0 0.0
    %1291 = vmatpush2.msra.mxu0 0.0
    %1292 = vmatprep.subr.mxu0 0.0
    %1293 = vmatpush2.msra.mxu0 0.0
    %1294 = vmatprep.subr.mxu0 0.0
    %1295 = vmatpush2.msra.mxu0 0.0
    %1296 = vmatprep.subr.mxu0 0.0
    %1297 = vmatpush2.msra.mxu0 0.0
    %1298 = vmatprep.subr.mxu0 0.0
    %1299 = vmatpush2.msra.mxu0 0.0
    %1300 = vmatprep.subr.mxu0 0.0
    %1301 = vmatpush2.msra.mxu0 0.0
    %1302 = vmatprep.subr.mxu0 0.0
    %1303 = vmatpush2.msra.mxu0 0.0
    %1304 = vmatprep.subr.mxu0 0.0
    %1305 = vmatpush2.msra.mxu0 0.0
    %1306 = vmatprep.subr.mxu0 0.0
    %1307 = vmatpush2.msra.mxu0 0.0
    %1308 = vmatprep.subr.mxu0 0.0
    %1309 = vmatpush2.msra.mxu0 0.0
    %1310 = vmatprep.subr.mxu0 0.0
    %1311 = vmatpush2.msra.mxu0 0.0
    %1312 = vmatprep.subr.mxu0 0.0
    %1313 = vmatpush2.msra.mxu0 0.0
    %1314 = vmatprep.subr.mxu0 0.0
    %1315 = vmatpush2.msra.mxu0 0.0
    %1316 = vmatprep.subr.mxu0 0.0
    %1317 = vmatpush2.msra.mxu0 0.0
    %1318 = vmatprep.subr.mxu0 0.0
    %1319 = vmatpush2.msra.mxu0 0.0
    %1320 = vmatprep.mubr.f32.mxu0 0.0
    %v1321 = vand.u32 %v115, 4294901760
    %1322 = vmatmul.mubr.f32.gmra.mxu0 %v1321
    %v1323 = vpop.f32.mrf.mxu0
    %v1324 = vadd.f32 %v1147, %v1323
    %v1325 = vpop.f32.mrf.mxu0
    %1326 = vmatprep.mubr.f32.mxu0 0.0
    %v1327 = vand.u32 %v116, 4294901760
    %1328 = vmatmul.mubr.f32.gmra.mxu0 %v1327
    %v1329 = vpop.f32.mrf.mxu0
    %v1330 = vadd.f32 %v1153, %v1329
    %v1331 = vpop.f32.mrf.mxu0
    %1332 = vmatprep.mubr.f32.mxu0 0.0
    %v1333 = vand.u32 %v117, 4294901760
    %1334 = vmatmul.mubr.f32.gmra.mxu0 %v1333
    %v1335 = vpop.f32.mrf.mxu0
    %v1336 = vadd.f32 %v1159, %v1335
    %v1337 = vpop.f32.mrf.mxu0
    %1338 = vmatprep.mubr.f32.mxu0 0.0
    %v1339 = vand.u32 %v118, 4294901760
    %1340 = vmatmul.mubr.f32.gmra.mxu0 %v1339
    %v1341 = vpop.f32.mrf.mxu0
    %v1342 = vadd.f32 %v1165, %v1341
    %v1343 = vpop.f32.mrf.mxu0
    %1344 = vmatprep.mubr.f32.mxu0 0.0
    %v1345 = vand.u32 %v119, 4294901760
    %1346 = vmatmul.mubr.f32.gmra.mxu0 %v1345
    %v1347 = vpop.f32.mrf.mxu0
    %v1348 = vadd.f32 %v1171, %v1347
    %v1349 = vpop.f32.mrf.mxu0
    %1350 = vmatprep.mubr.f32.mxu0 0.0
    %v1351 = vand.u32 %v120, 4294901760
    %1352 = vmatmul.mubr.f32.gmra.mxu0 %v1351
    %v1353 = vpop.f32.mrf.mxu0
    %v1354 = vadd.f32 %v1177, %v1353
    %v1355 = vpop.f32.mrf.mxu0
    %1356 = vmatprep.mubr.f32.mxu0 0.0
    %v1357 = vand.u32 %v121, 4294901760
    %1358 = vmatmul.mubr.f32.gmra.mxu0 %v1357
    %v1359 = vpop.f32.mrf.mxu0
    %v1360 = vadd.f32 %v1183, %v1359
    %v1361 = vpop.f32.mrf.mxu0
    %1362 = vmatprep.mubr.f32.mxu0 0.0
    %v1363 = vand.u32 %v122, 4294901760
    %1364 = vmatmul.mubr.f32.gmra.mxu0 %v1363
    %v1365 = vpop.f32.mrf.mxu0
    %v1366 = vadd.f32 %v1189, %v1365
    %v1367 = vpop.f32.mrf.mxu0
    %1368 = vmatprep.mubr.f32.mxu0 0.0
    %v1369 = vand.u32 %v123, 4294901760
    %1370 = vmatmul.mubr.f32.gmra.mxu0 %v1369
    %v1371 = vpop.f32.mrf.mxu0
    %v1372 = vadd.f32 %v1195, %v1371
    %v1373 = vpop.f32.mrf.mxu0
    %1374 = vmatprep.mubr.f32.mxu0 0.0
    %v1375 = vand.u32 %v124, 4294901760
    %1376 = vmatmul.mubr.f32.gmra.mxu0 %v1375
    %v1377 = vpop.f32.mrf.mxu0
    %v1378 = vadd.f32 %v1201, %v1377
    %v1379 = vpop.f32.mrf.mxu0
    %1380 = vmatprep.mubr.f32.mxu0 0.0
    %v1381 = vand.u32 %v125, 4294901760
    %1382 = vmatmul.mubr.f32.gmra.mxu0 %v1381
    %v1383 = vpop.f32.mrf.mxu0
    %v1384 = vadd.f32 %v1207, %v1383
    %v1385 = vpop.f32.mrf.mxu0
    %1386 = vmatprep.mubr.f32.mxu0 0.0
    %v1387 = vand.u32 %v126, 4294901760
    %1388 = vmatmul.mubr.f32.gmra.mxu0 %v1387
    %v1389 = vpop.f32.mrf.mxu0
    %v1390 = vadd.f32 %v1213, %v1389
    %v1391 = vpop.f32.mrf.mxu0
    %1392 = vmatprep.mubr.f32.mxu0 0.0
    %v1393 = vand.u32 %v127, 4294901760
    %1394 = vmatmul.mubr.f32.gmra.mxu0 %v1393
    %v1395 = vpop.f32.mrf.mxu0
    %v1396 = vadd.f32 %v1219, %v1395
    %v1397 = vpop.f32.mrf.mxu0
    %1398 = vmatprep.mubr.f32.mxu0 0.0
    %v1399 = vand.u32 %v128, 4294901760
    %1400 = vmatmul.mubr.f32.gmra.mxu0 %v1399
    %v1401 = vpop.f32.mrf.mxu0
    %v1402 = vadd.f32 %v1225, %v1401
    %v1403 = vpop.f32.mrf.mxu0
    %1404 = vmatprep.mubr.f32.mxu0 0.0
    %v1405 = vand.u32 %v129, 4294901760
    %1406 = vmatmul.mubr.f32.gmra.mxu0 %v1405
    %v1407 = vpop.f32.mrf.mxu0
    %v1408 = vadd.f32 %v1231, %v1407
    %v1409 = vpop.f32.mrf.mxu0
    %1410 = vmatprep.mubr.f32.mxu0 0.0
    %v1411 = vand.u32 %v130, 4294901760
    %1412 = vmatmul.mubr.f32.gmra.mxu0 %v1411
    %v1413 = vpop.f32.mrf.mxu0
    %v1414 = vadd.f32 %v1237, %v1413
    %v1415 = vpop.f32.mrf.mxu0
    %1416 = vdwg.mxu0
    %1417 = vxpose.xlu0.b32.start [1/16] %v1324, 128
    %1418 = vxpose.xlu0.b32.cont [2/16] %v1330, 128
    %1419 = vxpose.xlu0.b32.cont [3/16] %v1336, 128
    %1420 = vxpose.xlu0.b32.cont [4/16] %v1342, 128
    %1421 = vxpose.xlu0.b32.cont [5/16] %v1348, 128
    %1422 = vxpose.xlu0.b32.cont [6/16] %v1354, 128
    %1423 = vxpose.xlu0.b32.cont [7/16] %v1360, 128
    %1424 = vxpose.xlu0.b32.cont [8/16] %v1366, 128
    %1425 = vxpose.xlu0.b32.cont [9/16] %v1372, 128
    %1426 = vxpose.xlu0.b32.cont [10/16] %v1378, 128
    %1427 = vxpose.xlu0.b32.cont [11/16] %v1384, 128
    %1428 = vxpose.xlu0.b32.cont [12/16] %v1390, 128
    %1429 = vxpose.xlu0.b32.cont [13/16] %v1396, 128
    %1430 = vxpose.xlu0.b32.cont [14/16] %v1402, 128
    %1431 = vxpose.xlu0.b32.cont [15/16] %v1408, 128
    %1432 = vxpose.xlu0.b32.end [16/16] %v1414, 128
    %v1433 = vpop.trf.xlu0
    %v1434 = vpop.trf.xlu0
    %v1435 = vpop.trf.xlu0
    %v1436 = vpop.trf.xlu0
    %v1437 = vpop.trf.xlu0
    %v1438 = vpop.trf.xlu0
    %v1439 = vpop.trf.xlu0
    %v1440 = vpop.trf.xlu0
    %v1441 = vpop.trf.xlu0
    %v1442 = vpop.trf.xlu0
    %v1443 = vpop.trf.xlu0
    %v1444 = vpop.trf.xlu0
    %v1445 = vpop.trf.xlu0
    %v1446 = vpop.trf.xlu0
    %v1447 = vpop.trf.xlu0
    %v1448 = vpop.trf.xlu0
    %1449 = vst [vmem:[#allocation7] sm:$0xff] %v1433
    %1450 = vst [vmem:[#allocation7 + $0x8] sm:$0xff] %v1434
    %1451 = vst [vmem:[#allocation7 + $0x10] sm:$0xff] %v1435
    %1452 = vst [vmem:[#allocation7 + $0x18] sm:$0xff] %v1436
    %1453 = vst [vmem:[#allocation7 + $0x20] sm:$0xff] %v1437
    %1454 = vst [vmem:[#allocation7 + $0x28] sm:$0xff] %v1438
    %1455 = vst [vmem:[#allocation7 + $0x30] sm:$0xff] %v1439
    %1456 = vst [vmem:[#allocation7 + $0x38] sm:$0xff] %v1440
    %1457 = vst [vmem:[#allocation7 + $0x40] sm:$0xff] %v1441
    %1458 = vst [vmem:[#allocation7 + $0x48] sm:$0xff] %v1442
    %1459 = vst [vmem:[#allocation7 + $0x50] sm:$0xff] %v1443
    %1460 = vst [vmem:[#allocation7 + $0x58] sm:$0xff] %v1444
    %1461 = vst [vmem:[#allocation7 + $0x60] sm:$0xff] %v1445
    %1462 = vst [vmem:[#allocation7 + $0x68] sm:$0xff] %v1446
    %1463 = vst [vmem:[#allocation7 + $0x70] sm:$0xff] %v1447
    %1464 = vst [vmem:[#allocation7 + $0x78] sm:$0xff] %v1448
    %v1465 = vmax.f32 %v1324, %v1348
    %v1466 = vmax.f32 %v1330, %v1354
    %v1467 = vmax.f32 %v1336, %v1360
    %v1468 = vmax.f32 %v1342, %v1366
    %v1469 = vmax.f32 %v1465, %v1372
    %v1470 = vmax.f32 %v1466, %v1378
    %v1471 = vmax.f32 %v1467, %v1384
    %v1472 = vmax.f32 %v1468, %v1390
    %v1473 = vmax.f32 %v1469, %v1396
    %v1474 = vmax.f32 %v1470, %v1402
    %v1475 = vmax.f32 %v1471, %v1408
    %v1476 = vmax.f32 %v1472, %v1414
    %v1477 = vmax.f32 %v1473, %v1474
    %v1478 = vmax.f32 %v1475, %v1476
    %v1479 = vmax.f32 %v1477, %v1478
    %v1480 = vrot.slane %v1479, 4
    %v1481 = vmax.f32 %v1479, %v1480
    %v1482 = vrot.slane %v1481, 2
    %v1483 = vmax.f32 %v1481, %v1482
    %v1484 = vrot.slane %v1483, 1
    %v1485 = vmax.f32 %v1483, %v1484
    %v1486 = vsub.f32 %v1324, %v1485
    %v1487 = vsub.f32 %v1330, %v1485
    %v1488 = vsub.f32 %v1336, %v1485
    %v1489 = vsub.f32 %v1342, %v1485
    %v1490 = vsub.f32 %v1348, %v1485
    %v1491 = vsub.f32 %v1354, %v1485
    %v1492 = vsub.f32 %v1360, %v1485
    %v1493 = vsub.f32 %v1366, %v1485
    %v1494 = vsub.f32 %v1372, %v1485
    %v1495 = vsub.f32 %v1378, %v1485
    %v1496 = vsub.f32 %v1384, %v1485
    %v1497 = vsub.f32 %v1390, %v1485
    %v1498 = vsub.f32 %v1396, %v1485
    %v1499 = vsub.f32 %v1402, %v1485
    %v1500 = vsub.f32 %v1408, %v1485
    %v1501 = vsub.f32 %v1414, %v1485
    %v1502 = vmul.f32 %v1486, 1.442695
    %v1503 = vpow.pop %v1502
    %v1504 = vmul.f32 %v1487, 1.442695
    %v1505 = vpow.pop %v1504
    %v1506 = vmul.f32 %v1488, 1.442695
    %v1507 = vpow.pop %v1506
    %v1508 = vmul.f32 %v1489, 1.442695
    %v1509 = vpow.pop %v1508
    %v1510 = vmul.f32 %v1490, 1.442695
    %v1511 = vpow.pop %v1510
    %v1512 = vmul.f32 %v1491, 1.442695
    %v1513 = vpow.pop %v1512
    %v1514 = vmul.f32 %v1492, 1.442695
    %v1515 = vpow.pop %v1514
    %v1516 = vmul.f32 %v1493, 1.442695
    %v1517 = vpow.pop %v1516
    %v1518 = vmul.f32 %v1494, 1.442695
    %v1519 = vpow.pop %v1518
    %v1520 = vmul.f32 %v1495, 1.442695
    %v1521 = vpow.pop %v1520
    %v1522 = vmul.f32 %v1496, 1.442695
    %v1523 = vpow.pop %v1522
    %v1524 = vmul.f32 %v1497, 1.442695
    %v1525 = vpow.pop %v1524
    %v1526 = vmul.f32 %v1498, 1.442695
    %v1527 = vpow.pop %v1526
    %v1528 = vmul.f32 %v1499, 1.442695
    %v1529 = vpow.pop %v1528
    %v1530 = vmul.f32 %v1500, 1.442695
    %v1531 = vpow.pop %v1530
    %v1532 = vmul.f32 %v1501, 1.442695
    %v1533 = vpow.pop %v1532
    %v1534 = vadd.f32 %v1503, %v1505
    %v1535 = vadd.f32 %v1534, %v1507
    %v1536 = vadd.f32 %v1535, %v1509
    %v1537 = vadd.f32 %v1536, %v1511
    %v1538 = vadd.f32 %v1537, %v1513
    %v1539 = vadd.f32 %v1538, %v1515
    %v1540 = vadd.f32 %v1539, %v1517
    %v1541 = vadd.f32 %v1540, %v1519
    %v1542 = vadd.f32 %v1541, %v1521
    %v1543 = vadd.f32 %v1542, %v1523
    %v1544 = vadd.f32 %v1543, %v1525
    %v1545 = vadd.f32 %v1544, %v1527
    %v1546 = vadd.f32 %v1545, %v1529
    %v1547 = vadd.f32 %v1546, %v1531
    %v1548 = vadd.f32 %v1547, %v1533
    %v1549 = vrot.slane %v1548, 4
    %v1550 = vadd.f32 %v1548, %v1549
    %v1551 = vrot.slane %v1550, 2
    %v1552 = vadd.f32 %v1550, %v1551
    %v1553 = vrot.slane %v1552, 1
    %v1554 = vadd.f32 %v1552, %v1553
    %v1555 = vlog2.pop %v1554
    %v1556 = vmul.f32 %v1555, 0.6931472
    %v1557 = vadd.f32 %v1485, %v1556
    %v1558 = vlaneseq
    %v1559 = vshrl.u32 %v1558, 7
    %v1560 = vsub.s32 0, %v1559
    %v1561 = vrot.slane %v45, %v1560
    %vm1562 = vcmp.eq.s32.totalorder %v47, %v1561
    %vm1563 = vcmp.eq.s32.totalorder %v48, %v1561
    %vm1564 = vcmp.eq.s32.totalorder %v49, %v1561
    %vm1565 = vcmp.eq.s32.totalorder %v50, %v1561
    %vm1566 = vcmp.eq.s32.totalorder %v51, %v1561
    %vm1567 = vcmp.eq.s32.totalorder %v52, %v1561
    %vm1568 = vcmp.eq.s32.totalorder %v53, %v1561
    %vm1569 = vcmp.eq.s32.totalorder %v54, %v1561
    %vm1570 = vcmp.eq.s32.totalorder %v55, %v1561
    %vm1571 = vcmp.eq.s32.totalorder %v56, %v1561
    %vm1572 = vcmp.eq.s32.totalorder %v57, %v1561
    %vm1573 = vcmp.eq.s32.totalorder %v58, %v1561
    %vm1574 = vcmp.eq.s32.totalorder %v59, %v1561
    %vm1575 = vcmp.eq.s32.totalorder %v60, %v1561
    %vm1576 = vcmp.eq.s32.totalorder %v61, %v1561
    %vm1577 = vcmp.eq.s32.totalorder %v62, %v1561
    %v1578 = vsel %vm1562, %v1324, 0.0
    %v1579 = vsel %vm1563, %v1330, 0.0
    %v1580 = vsel %vm1564, %v1336, 0.0
    %v1581 = vsel %vm1565, %v1342, 0.0
    %v1582 = vsel %vm1566, %v1348, 0.0
    %v1583 = vsel %vm1567, %v1354, 0.0
    %v1584 = vsel %vm1568, %v1360, 0.0
    %v1585 = vsel %vm1569, %v1366, 0.0
    %v1586 = vsel %vm1570, %v1372, 0.0
    %v1587 = vsel %vm1571, %v1378, 0.0
    %v1588 = vsel %vm1572, %v1384, 0.0
    %v1589 = vsel %vm1573, %v1390, 0.0
    %v1590 = vsel %vm1574, %v1396, 0.0
    %v1591 = vsel %vm1575, %v1402, 0.0
    %v1592 = vsel %vm1576, %v1408, 0.0
    %v1593 = vsel %vm1577, %v1414, 0.0
    %v1594 = vadd.f32 %v1578, %v1579
    %v1595 = vadd.f32 %v1594, %v1580
    %v1596 = vadd.f32 %v1595, %v1581
    %v1597 = vadd.f32 %v1596, %v1582
    %v1598 = vadd.f32 %v1597, %v1583
    %v1599 = vadd.f32 %v1598, %v1584
    %v1600 = vadd.f32 %v1599, %v1585
    %v1601 = vadd.f32 %v1600, %v1586
    %v1602 = vadd.f32 %v1601, %v1587
    %v1603 = vadd.f32 %v1602, %v1588
    %v1604 = vadd.f32 %v1603, %v1589
    %v1605 = vadd.f32 %v1604, %v1590
    %v1606 = vadd.f32 %v1605, %v1591
    %v1607 = vadd.f32 %v1606, %v1592
    %v1608 = vadd.f32 %v1607, %v1593
    %v1609 = vrot.slane %v1608, 4
    %v1610 = vadd.f32 %v1608, %v1609
    %v1611 = vrot.slane %v1610, 2
    %v1612 = vadd.f32 %v1610, %v1611
    %v1613 = vrot.slane %v1612, 1
    %v1614 = vadd.f32 %v1612, %v1613
    %v1615 = vsub.f32 %v1557, %v1614
    %s1616 = smul.u32 0, 128
    %v1617 = vlaneseq
    %v1618 = vand.u32 %v1617, 127
    %v1619 = vstv %s1616
    %v1620 = vadd.s32 %v1619, %v1618
    %vm1621 = vcmp.lt.s32.totalorder %v1620, 16
    %v1622 = vsel %vm1621, %v1615, 0.0
    %1623 = vst [vmem:[#allocation8] sm:$0x1] %v1622
    // Predicated region
    $region22: #{tpu_custom_call.1} parent=1 // pred_check
      _
    $region23: #{tpu_custom_call.1} parent=1 // pred_check_branch
      %1625 = sbr.rel (0) target = $region25
    $region24: #{tpu_custom_call.1} parent=1 // pred_region
      %s1627 = ssub.s32 2048, 2048
      %1628 = vsyncadd [#allocation4], %s1627
      %s1629 = sshll.u32 [#allocation7], 4
      %s1630 = int_to_ptr.vmem [resolvable:$true] %s1629
      %1635 = dma.vmem_to_hbm [thread:$0]  %s1630, 2048, %s3, [#allocation4], 128, 128, 8
    $region25: #{tpu_custom_call.1} parent=1 // pred_fallthru
      _
    // Predicated region
    $region26: #{tpu_custom_call.1} parent=1 // pred_check
      _
    $region27: #{tpu_custom_call.1} parent=1 // pred_check_branch
      %1637 = sbr.rel (0) target = $region29
    $region28: #{tpu_custom_call.1} parent=1 // pred_region
      %s1639 = ssub.s32 16, 16
      %1640 = vsyncadd [#allocation9], %s1639
      %s1642 = sshll.u32 [#allocation8], 4
      %s1643 = int_to_ptr.vmem [resolvable:$true] %s1642
      %1645 = dma.vmem_to_hbm [thread:$0]  %s1643, 16, %s4, [#allocation9]
    $region29: #{tpu_custom_call.1} parent=1 // pred_fallthru
      _
    // Predicated region
    $region30: #{tpu_custom_call.1} parent=1 // pred_check
      _
    $region31: #{tpu_custom_call.1} parent=1 // pred_check_branch
      %1647 = sbr.rel (0) target = $region33
    $region32: #{tpu_custom_call.1} parent=1 // pred_region
      %1648 = dma.done [#allocation4], 2048
    $region33: #{tpu_custom_call.1} parent=1 // pred_fallthru
      _
    // Predicated region
    $region34: #{tpu_custom_call.1} parent=1 // pred_check
      _
    $region35: #{tpu_custom_call.1} parent=1 // pred_check_branch
      %1650 = sbr.rel (0) target = $region37
    $region36: #{tpu_custom_call.1} parent=1 // pred_region
      %1651 = dma.done [#allocation9], 16
    $region37: #{tpu_custom_call.1} parent=1 // pred_fallthru
      _
    %1652 = vsyncpa [#allocation3], 1
    %1653 = vsyncpa [#allocation6], 1
    %1654 = vsyncpa [#allocation4], 1
    %1655 = vsyncpa [#allocation9], 1

</llo_original>
